<compile_context>
chip_gen: v7x
topology: tpu7x:2x2x1
jax: 0.10.0
libtpu: 0.0.40
codegen_flags: <defaults>
</compile_context>

<pallas_src>
import functools

import jax
import jax.numpy as jnp
from jax import lax
from jax.experimental import pallas as pl
from jax.experimental.pallas import tpu as pltpu


def _lstm_tagger_kernel(x_ref, wih_ref, whh_ref, b_ref, wout_ref, bout_ref,
                        out_ref, hs_ref, *, seq_len, tb):
    """One batch-tile: full LSTM recurrence + hidden2tag + log_softmax."""
    H = whh_ref.shape[0]                      # hidden_dim (whh is (H, 4H))

    wih = wih_ref[...]                        # (D, 4H)   (i/f/o cols pre-scaled by 0.5)
    whh = whh_ref[...]                        # (H, 4H)   (i/f/o cols pre-scaled by 0.5)
    b = b_ref[...]                            # (1, 4H)   (bias_ih + bias_hh, pre-scaled)
    wout = wout_ref[...]                      # (H, T)
    bout = bout_ref[...]                      # (1, T)

    # (1) Input projection hoisted out of the recurrence: one big matmul.
    xw = jnp.dot(x_ref[...].astype(wih.dtype), wih,
                 preferred_element_type=jnp.float32)          # (S*tb, 4H), f32

    h = jnp.zeros((tb, H), jnp.float32)
    c = jnp.zeros((tb, H), jnp.float32)

    # (3) Fully unrolled static loop — only the irreducible h->h chain per step.
    for t in range(seq_len):
        gates = (xw[t * tb:(t + 1) * tb, :]
                 + jnp.dot(h.astype(whh.dtype), whh,
                           preferred_element_type=jnp.float32)
                 + b)                                         # (tb, 4H), f32

        # (4) One full-row tanh; sigmoid recovered as 0.5*(tanh(z/2)+1).
        #     PyTorch gate order: i, f, g, o.
        tg = jnp.tanh(gates)
        i_g = 0.5 * (tg[:, 0:H] + 1.0)
        f_g = 0.5 * (tg[:, H:2 * H] + 1.0)
        g_g = tg[:, 2 * H:3 * H]
        o_g = 0.5 * (tg[:, 3 * H:4 * H] + 1.0)

        c = f_g * c + i_g * g_g
        h = o_g * jnp.tanh(c)

        hs_ref[t * tb:(t + 1) * tb, :] = h                    # stash h_t (static slice)

    # (2) hidden2tag + log_softmax hoisted out of the loop; single dense store.
    hs = hs_ref[...]                                          # (S*tb, H)
    tag = jnp.dot(hs.astype(wout.dtype), wout,
                  preferred_element_type=jnp.float32) + bout  # (S*tb, T)
    m = jnp.max(tag, axis=-1, keepdims=True)
    z = tag - m
    lse = jnp.log(jnp.sum(jnp.exp(z), axis=-1, keepdims=True))
    out_ref[...] = (z - lse).astype(out_ref.dtype)            # one unmasked-width store


def lstm_tagger_forward_batched(sentences, char_reps, params, *,
                                batch_tile=None, matmul_dtype=jnp.float32):
    """B independent sentences at once. sentences:(B,S) int32, char_reps:(B,S,C)."""
    B, S = sentences.shape
    emb = params["embedding"][sentences]                      # (B, S, E) — plain-JAX gather
    x = jnp.concatenate([emb, char_reps], axis=-1).astype(jnp.float32)  # (B, S, D)
    D = x.shape[-1]
    H = params["w_hh_t"].shape[0]
    T = params["w_out_t"].shape[1]

    if batch_tile is None:
        batch_tile = B
    assert B % batch_tile == 0, "batch must divide evenly into batch tiles"
    n_bt = B // batch_tile
    rows = S * batch_tile                                     # rows per batch tile

    # tanh-fusion pre-scale: sigmoid(z) = 0.5*(tanh(0.5*z)+1)
    # -> scale the i/f/o gate columns (not g) of W_ih, W_hh and the bias by 0.5.
    scale = jnp.concatenate([
        jnp.full((2 * H,), 0.5, jnp.float32),   # i, f
        jnp.ones((H,), jnp.float32),            # g
        jnp.full((H,), 0.5, jnp.float32),       # o
    ])
    wih = (params["w_ih_t"] * scale[None, :]).astype(matmul_dtype)   # (D, 4H)
    whh = (params["w_hh_t"] * scale[None, :]).astype(matmul_dtype)   # (H, 4H)
    b = ((params["b_ih"] + params["b_hh"]) * scale).reshape(1, -1).astype(jnp.float32)
    wout = params["w_out_t"].astype(matmul_dtype)                    # (H, T)
    bout = params["b_out"].reshape(1, -1).astype(jnp.float32)        # (1, T)

    # Pack time-major within each batch tile: row = bt*S*TB + t*TB + b
    # so each per-step slice inside the kernel is a contiguous (TB, D) block.
    x_flat = (x.reshape(n_bt, batch_tile, S, D)
                .transpose(0, 2, 1, 3)
                .reshape(n_bt * rows, D)).astype(matmul_dtype)

    kernel = functools.partial(_lstm_tagger_kernel, seq_len=S, tb=batch_tile)

    itemsize = jnp.dtype(matmul_dtype).itemsize
    flops = 2 * B * S * (D * 4 * H + H * 4 * H + H * T)
    transcendentals = B * S * (4 * H + H + T)
    bytes_accessed = ((x_flat.size + wih.size + whh.size + wout.size) * itemsize
                      + (b.size + bout.size + B * S * T) * 4)

    out_flat = pl.pallas_call(
        kernel,
        out_shape=jax.ShapeDtypeStruct((n_bt * rows, T), jnp.float32),
        grid_spec=pltpu.PrefetchScalarGridSpec(
            num_scalar_prefetch=0,
            grid=(n_bt,),                         # batch-tile axis (independent sentences)
            in_specs=[
                pl.BlockSpec((rows, D), lambda i: (i, 0)),      # x: per-tile block
                pl.BlockSpec(wih.shape, lambda i: (0, 0)),      # weights resident in VMEM
                pl.BlockSpec(whh.shape, lambda i: (0, 0)),
                pl.BlockSpec(b.shape, lambda i: (0, 0)),
                pl.BlockSpec(wout.shape, lambda i: (0, 0)),
                pl.BlockSpec(bout.shape, lambda i: (0, 0)),
            ],
            out_specs=pl.BlockSpec((rows, T), lambda i: (i, 0)),
            scratch_shapes=[pltpu.VMEM((rows, H), jnp.float32)],  # per-step h stash
        ),
        compiler_params=pltpu.CompilerParams(
            # batch-tile axis is embarrassingly parallel -> megacore / v7x 2nd TC.
            dimension_semantics=("parallel",),
        ),
        cost_estimate=pl.CostEstimate(flops=flops,
                                      transcendentals=transcendentals,
                                      bytes_accessed=bytes_accessed),
    )(x_flat, wih, whh, b, wout, bout)

    # Undo the time-major packing: (n_bt, S, TB, T) -> (B, S, T)
    out = (out_flat.reshape(n_bt, S, batch_tile, T)
                   .transpose(0, 2, 1, 3)
                   .reshape(B, S, T))
    # NOTE: if seq_len ever grows large, add an "arbitrary" seq grid axis and
    # carry (h, c) in VMEM scratch across grid iterations; not needed at S=8.
    return out


def lstm_tagger_forward(sentence, char_rep, params, *, matmul_dtype=jnp.float32):
    """Module-equivalent single-sentence forward (batch of 1)."""
    out = lstm_tagger_forward_batched(sentence[None, :], char_rep[None, ...], params,
                                      batch_tile=1, matmul_dtype=matmul_dtype)
    return out[0]


def make_params(key, vocab_size, embedding_dim, char_dim, hidden_dim, tagset_size):
    """Deterministic synthetic parameters mirroring nn.Embedding/nn.LSTM/nn.Linear shapes."""
    D = embedding_dim + char_dim
    H = hidden_dim
    k = 1.0 / jnp.sqrt(jnp.float32(H))
    keys = jax.random.split(key, 7)
    return {
        "embedding": jax.random.normal(keys[0], (vocab_size, embedding_dim), jnp.float32),
        # stored pre-transposed: (input, 4H) and (hidden, 4H)
        "w_ih_t": jax.random.uniform(keys[1], (D, 4 * H), jnp.float32, -k, k),
        "w_hh_t": jax.random.uniform(keys[2], (H, 4 * H), jnp.float32, -k, k),
        "b_ih": jax.random.uniform(keys[3], (4 * H,), jnp.float32, -k, k),
        "b_hh": jax.random.uniform(keys[4], (4 * H,), jnp.float32, -k, k),
        "w_out_t": jax.random.uniform(keys[5], (H, tagset_size), jnp.float32, -k, k),
        "b_out": jax.random.uniform(keys[6], (tagset_size,), jnp.float32, -k, k),
    }


def reference_forward(sentence, char_rep, params):
    """Pure-JAX reference of the original module forward (single sentence)."""
    emb = params["embedding"][sentence]
    x = jnp.concatenate([emb, char_rep], axis=1).astype(jnp.float32)
    H = params["w_hh_t"].shape[0]
    b = params["b_ih"] + params["b_hh"]

    def step(carry, x_t):
        h, c = carry
        gates = x_t @ params["w_ih_t"] + h @ params["w_hh_t"] + b
        i = jax.nn.sigmoid(gates[0:H])
        f = jax.nn.sigmoid(gates[H:2 * H])
        g = jnp.tanh(gates[2 * H:3 * H])
        o = jax.nn.sigmoid(gates[3 * H:4 * H])
        c_new = f * c + i * g
        h_new = o * jnp.tanh(c_new)
        return (h_new, c_new), h_new

    _, hs = lax.scan(step, (jnp.zeros((H,)), jnp.zeros((H,))), x)
    tag = hs @ params["w_out_t"] + params["b_out"]
    return jax.nn.log_softmax(tag, axis=1)


if __name__ == "__main__":
    vocab_size = 50
    embedding_dim = 16
    char_dim = 8
    hidden_dim = 32
    tagset_size = 8
    seq_len = 8
    batch = 16
    batch_tile = 8            # grid=(2,), "parallel" -> both TCs on v7x

    key = jax.random.PRNGKey(0)
    k_sent, k_char, k_par = jax.random.split(key, 3)

    sentences = jax.random.randint(k_sent, (batch, seq_len), 0, vocab_size)
    char_reps = jax.random.normal(k_char, (batch, seq_len, char_dim), jnp.float32)
    params = make_params(k_par, vocab_size, embedding_dim, char_dim,
                         hidden_dim, tagset_size)

    ref = jax.vmap(reference_forward, in_axes=(0, 0, None))(sentences, char_reps, params)

    # 1) Batched f32 path (bitwise-faithful to the module semantics).
    out = lstm_tagger_forward_batched(sentences, char_reps, params, batch_tile=batch_tile)
    out = jax.block_until_ready(out)
    assert out.shape == (batch, seq_len, tagset_size)
    assert jnp.allclose(out, ref, atol=1e-4, rtol=1e-4), "batched f32 mismatch vs reference"

    # 2) Module-equivalent single-sentence path.
    out1 = jax.block_until_ready(lstm_tagger_forward(sentences[0], char_reps[0], params))
    assert out1.shape == (seq_len, tagset_size)
    assert jnp.allclose(out1, ref[0], atol=1e-4, rtol=1e-4), "single-sentence mismatch"

    # 3) bf16 MXU-operand variant (v5e/v6e): f32 accumulation, f32 gate math.
    out_bf16 = lstm_tagger_forward_batched(sentences, char_reps, params,
                                           batch_tile=batch_tile,
                                           matmul_dtype=jnp.bfloat16)
    out_bf16 = jax.block_until_ready(out_bf16)
    assert jnp.allclose(out_bf16, ref, atol=2e-1, rtol=2e-1), "bf16 variant drifted too far"

    print("KERNEL_OK")
</pallas_src>

<mosaic_0001>
module attributes {stable_mosaic.version = 11 : i64} {
  func.func @_lstm_tagger_kernel(%arg0: i32, %arg1: memref<64x24xf32, #tpu.memory_space<vmem>>, %arg2: memref<24x128xf32, #tpu.memory_space<vmem>>, %arg3: memref<32x128xf32, #tpu.memory_space<vmem>>, %arg4: memref<1x128xf32, #tpu.memory_space<vmem>>, %arg5: memref<32x8xf32, #tpu.memory_space<vmem>>, %arg6: memref<1x8xf32, #tpu.memory_space<vmem>>, %arg7: memref<64x8xf32, #tpu.memory_space<vmem>>, %arg8: memref<64x32xf32, #tpu.memory_space<vmem>>) attributes {dimension_semantics = [#tpu.dimension_semantics<parallel>], iteration_bounds = array<i64: 2>, scalar_prefetch = 0 : i64, scratch_operands = 1 : i64, tpu.core_type = #tpu.core_type<tc>, window_params = [{transform_indices = @transform_0, window_bounds = array<i64: 64, 24>}, {pipeline_mode = #tpu.pipeline_mode<synchronous>, transform_indices = @transform_1, window_bounds = array<i64: 24, 128>}, {pipeline_mode = #tpu.pipeline_mode<synchronous>, transform_indices = @transform_2, window_bounds = array<i64: 32, 128>}, {pipeline_mode = #tpu.pipeline_mode<synchronous>, transform_indices = @transform_3, window_bounds = array<i64: 1, 128>}, {pipeline_mode = #tpu.pipeline_mode<synchronous>, transform_indices = @transform_4, window_bounds = array<i64: 32, 8>}, {pipeline_mode = #tpu.pipeline_mode<synchronous>, transform_indices = @transform_5, window_bounds = array<i64: 1, 8>}, {transform_indices = @transform_6, window_bounds = array<i64: 64, 8>}]} {
    %c0 = arith.constant 0 : index
    %c0_0 = arith.constant 0 : index
    %0 = vector.load %arg2[%c0, %c0_0] : memref<24x128xf32, #tpu.memory_space<vmem>>, vector<24x128xf32>
    %c0_1 = arith.constant 0 : index
    %c0_2 = arith.constant 0 : index
    %1 = vector.load %arg3[%c0_1, %c0_2] : memref<32x128xf32, #tpu.memory_space<vmem>>, vector<32x128xf32>
    %c0_3 = arith.constant 0 : index
    %c0_4 = arith.constant 0 : index
    %2 = vector.load %arg4[%c0_3, %c0_4] : memref<1x128xf32, #tpu.memory_space<vmem>>, vector<1x128xf32>
    %c0_5 = arith.constant 0 : index
    %c0_6 = arith.constant 0 : index
    %3 = vector.load %arg5[%c0_5, %c0_6] : memref<32x8xf32, #tpu.memory_space<vmem>>, vector<32x8xf32>
    %c0_7 = arith.constant 0 : index
    %c0_8 = arith.constant 0 : index
    %4 = vector.load %arg6[%c0_7, %c0_8] : memref<1x8xf32, #tpu.memory_space<vmem>>, vector<1x8xf32>
    %c0_9 = arith.constant 0 : index
    %c0_10 = arith.constant 0 : index
    %5 = vector.load %arg1[%c0_9, %c0_10] : memref<64x24xf32, #tpu.memory_space<vmem>>, vector<64x24xf32>
    %cst = arith.constant dense<0.000000e+00> : vector<64x128xf32>
    %6 = tpu.matmul %5, %0, %cst {dimension_numbers = #tpu.dot_dimension_numbers<[1], [0], [0], [1], [0, 0, 1, 1], [], []>} : vector<64x24xf32>, vector<24x128xf32>, vector<64x128xf32> -> vector<64x128xf32>
    %cst_11 = arith.constant 0.000000e+00 : f32
    %7 = vector.broadcast %cst_11 : f32 to vector<8x32xf32>
    %cst_12 = arith.constant 0.000000e+00 : f32
    %8 = vector.broadcast %cst_12 : f32 to vector<8x32xf32>
    %9 = vector.extract_strided_slice %6 {offsets = [0, 0], sizes = [8, 128], strides = [1, 1]} : vector<64x128xf32> to vector<8x128xf32>
    %cst_13 = arith.constant dense<0.000000e+00> : vector<8x128xf32>
    %10 = tpu.matmul %7, %1, %cst_13 {dimension_numbers = #tpu.dot_dimension_numbers<[1], [0], [0], [1], [0, 0, 1, 1], [], []>} : vector<8x32xf32>, vector<32x128xf32>, vector<8x128xf32> -> vector<8x128xf32>
    %11 = arith.addf %9, %10 : vector<8x128xf32>
    %12 = vector.broadcast %2 : vector<1x128xf32> to vector<8x128xf32>
    %13 = arith.addf %11, %12 : vector<8x128xf32>
    %14 = math.tanh %13 : vector<8x128xf32>
    %15 = vector.extract_strided_slice %14 {offsets = [0, 0], sizes = [8, 32], strides = [1, 1]} : vector<8x128xf32> to vector<8x32xf32>
    %cst_14 = arith.constant 1.000000e+00 : f32
    %16 = vector.broadcast %cst_14 : f32 to vector<8x32xf32>
    %17 = arith.addf %15, %16 : vector<8x32xf32>
    %cst_15 = arith.constant 5.000000e-01 : f32
    %18 = vector.broadcast %cst_15 : f32 to vector<8x32xf32>
    %19 = arith.mulf %18, %17 : vector<8x32xf32>
    %20 = vector.extract_strided_slice %14 {offsets = [0, 32], sizes = [8, 32], strides = [1, 1]} : vector<8x128xf32> to vector<8x32xf32>
    %cst_16 = arith.constant 1.000000e+00 : f32
    %21 = vector.broadcast %cst_16 : f32 to vector<8x32xf32>
    %22 = arith.addf %20, %21 : vector<8x32xf32>
    %cst_17 = arith.constant 5.000000e-01 : f32
    %23 = vector.broadcast %cst_17 : f32 to vector<8x32xf32>
    %24 = arith.mulf %23, %22 : vector<8x32xf32>
    %25 = vector.extract_strided_slice %14 {offsets = [0, 64], sizes = [8, 32], strides = [1, 1]} : vector<8x128xf32> to vector<8x32xf32>
    %26 = vector.extract_strided_slice %14 {offsets = [0, 96], sizes = [8, 32], strides = [1, 1]} : vector<8x128xf32> to vector<8x32xf32>
    %cst_18 = arith.constant 1.000000e+00 : f32
    %27 = vector.broadcast %cst_18 : f32 to vector<8x32xf32>
    %28 = arith.addf %26, %27 : vector<8x32xf32>
    %cst_19 = arith.constant 5.000000e-01 : f32
    %29 = vector.broadcast %cst_19 : f32 to vector<8x32xf32>
    %30 = arith.mulf %29, %28 : vector<8x32xf32>
    %31 = arith.mulf %24, %8 : vector<8x32xf32>
    %32 = arith.mulf %19, %25 : vector<8x32xf32>
    %33 = arith.addf %31, %32 : vector<8x32xf32>
    %34 = math.tanh %33 : vector<8x32xf32>
    %35 = arith.mulf %30, %34 : vector<8x32xf32>
    %c0_20 = arith.constant 0 : index
    %c0_21 = arith.constant 0 : index
    %36 = vector.load %arg8[%c0_20, %c0_21] : memref<64x32xf32, #tpu.memory_space<vmem>>, vector<8x32xf32>
    tpu.vector_store %arg8[%c0_20, %c0_21], %35 {strides = array<i32>} : memref<64x32xf32, #tpu.memory_space<vmem>>, vector<8x32xf32>,
    %37 = vector.extract_strided_slice %6 {offsets = [8, 0], sizes = [8, 128], strides = [1, 1]} : vector<64x128xf32> to vector<8x128xf32>
    %cst_22 = arith.constant dense<0.000000e+00> : vector<8x128xf32>
    %38 = tpu.matmul %35, %1, %cst_22 {dimension_numbers = #tpu.dot_dimension_numbers<[1], [0], [0], [1], [0, 0, 1, 1], [], []>} : vector<8x32xf32>, vector<32x128xf32>, vector<8x128xf32> -> vector<8x128xf32>
    %39 = arith.addf %37, %38 : vector<8x128xf32>
    %40 = vector.broadcast %2 : vector<1x128xf32> to vector<8x128xf32>
    %41 = arith.addf %39, %40 : vector<8x128xf32>
    %42 = math.tanh %41 : vector<8x128xf32>
    %43 = vector.extract_strided_slice %42 {offsets = [0, 0], sizes = [8, 32], strides = [1, 1]} : vector<8x128xf32> to vector<8x32xf32>
    %cst_23 = arith.constant 1.000000e+00 : f32
    %44 = vector.broadcast %cst_23 : f32 to vector<8x32xf32>
    %45 = arith.addf %43, %44 : vector<8x32xf32>
    %cst_24 = arith.constant 5.000000e-01 : f32
    %46 = vector.broadcast %cst_24 : f32 to vector<8x32xf32>
    %47 = arith.mulf %46, %45 : vector<8x32xf32>
    %48 = vector.extract_strided_slice %42 {offsets = [0, 32], sizes = [8, 32], strides = [1, 1]} : vector<8x128xf32> to vector<8x32xf32>
    %cst_25 = arith.constant 1.000000e+00 : f32
    %49 = vector.broadcast %cst_25 : f32 to vector<8x32xf32>
    %50 = arith.addf %48, %49 : vector<8x32xf32>
    %cst_26 = arith.constant 5.000000e-01 : f32
    %51 = vector.broadcast %cst_26 : f32 to vector<8x32xf32>
    %52 = arith.mulf %51, %50 : vector<8x32xf32>
    %53 = vector.extract_strided_slice %42 {offsets = [0, 64], sizes = [8, 32], strides = [1, 1]} : vector<8x128xf32> to vector<8x32xf32>
    %54 = vector.extract_strided_slice %42 {offsets = [0, 96], sizes = [8, 32], strides = [1, 1]} : vector<8x128xf32> to vector<8x32xf32>
    %cst_27 = arith.constant 1.000000e+00 : f32
    %55 = vector.broadcast %cst_27 : f32 to vector<8x32xf32>
    %56 = arith.addf %54, %55 : vector<8x32xf32>
    %cst_28 = arith.constant 5.000000e-01 : f32
    %57 = vector.broadcast %cst_28 : f32 to vector<8x32xf32>
    %58 = arith.mulf %57, %56 : vector<8x32xf32>
    %59 = arith.mulf %52, %33 : vector<8x32xf32>
    %60 = arith.mulf %47, %53 : vector<8x32xf32>
    %61 = arith.addf %59, %60 : vector<8x32xf32>
    %62 = math.tanh %61 : vector<8x32xf32>
    %63 = arith.mulf %58, %62 : vector<8x32xf32>
    %c8 = arith.constant 8 : index
    %c0_29 = arith.constant 0 : index
    %64 = vector.load %arg8[%c8, %c0_29] : memref<64x32xf32, #tpu.memory_space<vmem>>, vector<8x32xf32>
    tpu.vector_store %arg8[%c8, %c0_29], %63 {strides = array<i32>} : memref<64x32xf32, #tpu.memory_space<vmem>>, vector<8x32xf32>,
    %65 = vector.extract_strided_slice %6 {offsets = [16, 0], sizes = [8, 128], strides = [1, 1]} : vector<64x128xf32> to vector<8x128xf32>
    %cst_30 = arith.constant dense<0.000000e+00> : vector<8x128xf32>
    %66 = tpu.matmul %63, %1, %cst_30 {dimension_numbers = #tpu.dot_dimension_numbers<[1], [0], [0], [1], [0, 0, 1, 1], [], []>} : vector<8x32xf32>, vector<32x128xf32>, vector<8x128xf32> -> vector<8x128xf32>
    %67 = arith.addf %65, %66 : vector<8x128xf32>
    %68 = vector.broadcast %2 : vector<1x128xf32> to vector<8x128xf32>
    %69 = arith.addf %67, %68 : vector<8x128xf32>
    %70 = math.tanh %69 : vector<8x128xf32>
    %71 = vector.extract_strided_slice %70 {offsets = [0, 0], sizes = [8, 32], strides = [1, 1]} : vector<8x128xf32> to vector<8x32xf32>
    %cst_31 = arith.constant 1.000000e+00 : f32
    %72 = vector.broadcast %cst_31 : f32 to vector<8x32xf32>
    %73 = arith.addf %71, %72 : vector<8x32xf32>
    %cst_32 = arith.constant 5.000000e-01 : f32
    %74 = vector.broadcast %cst_32 : f32 to vector<8x32xf32>
    %75 = arith.mulf %74, %73 : vector<8x32xf32>
    %76 = vector.extract_strided_slice %70 {offsets = [0, 32], sizes = [8, 32], strides = [1, 1]} : vector<8x128xf32> to vector<8x32xf32>
    %cst_33 = arith.constant 1.000000e+00 : f32
    %77 = vector.broadcast %cst_33 : f32 to vector<8x32xf32>
    %78 = arith.addf %76, %77 : vector<8x32xf32>
    %cst_34 = arith.constant 5.000000e-01 : f32
    %79 = vector.broadcast %cst_34 : f32 to vector<8x32xf32>
    %80 = arith.mulf %79, %78 : vector<8x32xf32>
    %81 = vector.extract_strided_slice %70 {offsets = [0, 64], sizes = [8, 32], strides = [1, 1]} : vector<8x128xf32> to vector<8x32xf32>
    %82 = vector.extract_strided_slice %70 {offsets = [0, 96], sizes = [8, 32], strides = [1, 1]} : vector<8x128xf32> to vector<8x32xf32>
    %cst_35 = arith.constant 1.000000e+00 : f32
    %83 = vector.broadcast %cst_35 : f32 to vector<8x32xf32>
    %84 = arith.addf %82, %83 : vector<8x32xf32>
    %cst_36 = arith.constant 5.000000e-01 : f32
    %85 = vector.broadcast %cst_36 : f32 to vector<8x32xf32>
    %86 = arith.mulf %85, %84 : vector<8x32xf32>
    %87 = arith.mulf %80, %61 : vector<8x32xf32>
    %88 = arith.mulf %75, %81 : vector<8x32xf32>
    %89 = arith.addf %87, %88 : vector<8x32xf32>
    %90 = math.tanh %89 : vector<8x32xf32>
    %91 = arith.mulf %86, %90 : vector<8x32xf32>
    %c16 = arith.constant 16 : index
    %c0_37 = arith.constant 0 : index
    %92 = vector.load %arg8[%c16, %c0_37] : memref<64x32xf32, #tpu.memory_space<vmem>>, vector<8x32xf32>
    tpu.vector_store %arg8[%c16, %c0_37], %91 {strides = array<i32>} : memref<64x32xf32, #tpu.memory_space<vmem>>, vector<8x32xf32>,
    %93 = vector.extract_strided_slice %6 {offsets = [24, 0], sizes = [8, 128], strides = [1, 1]} : vector<64x128xf32> to vector<8x128xf32>
    %cst_38 = arith.constant dense<0.000000e+00> : vector<8x128xf32>
    %94 = tpu.matmul %91, %1, %cst_38 {dimension_numbers = #tpu.dot_dimension_numbers<[1], [0], [0], [1], [0, 0, 1, 1], [], []>} : vector<8x32xf32>, vector<32x128xf32>, vector<8x128xf32> -> vector<8x128xf32>
    %95 = arith.addf %93, %94 : vector<8x128xf32>
    %96 = vector.broadcast %2 : vector<1x128xf32> to vector<8x128xf32>
    %97 = arith.addf %95, %96 : vector<8x128xf32>
    %98 = math.tanh %97 : vector<8x128xf32>
    %99 = vector.extract_strided_slice %98 {offsets = [0, 0], sizes = [8, 32], strides = [1, 1]} : vector<8x128xf32> to vector<8x32xf32>
    %cst_39 = arith.constant 1.000000e+00 : f32
    %100 = vector.broadcast %cst_39 : f32 to vector<8x32xf32>
    %101 = arith.addf %99, %100 : vector<8x32xf32>
    %cst_40 = arith.constant 5.000000e-01 : f32
    %102 = vector.broadcast %cst_40 : f32 to vector<8x32xf32>
    %103 = arith.mulf %102, %101 : vector<8x32xf32>
    %104 = vector.extract_strided_slice %98 {offsets = [0, 32], sizes = [8, 32], strides = [1, 1]} : vector<8x128xf32> to vector<8x32xf32>
    %cst_41 = arith.constant 1.000000e+00 : f32
    %105 = vector.broadcast %cst_41 : f32 to vector<8x32xf32>
    %106 = arith.addf %104, %105 : vector<8x32xf32>
    %cst_42 = arith.constant 5.000000e-01 : f32
    %107 = vector.broadcast %cst_42 : f32 to vector<8x32xf32>
    %108 = arith.mulf %107, %106 : vector<8x32xf32>
    %109 = vector.extract_strided_slice %98 {offsets = [0, 64], sizes = [8, 32], strides = [1, 1]} : vector<8x128xf32> to vector<8x32xf32>
    %110 = vector.extract_strided_slice %98 {offsets = [0, 96], sizes = [8, 32], strides = [1, 1]} : vector<8x128xf32> to vector<8x32xf32>
    %cst_43 = arith.constant 1.000000e+00 : f32
    %111 = vector.broadcast %cst_43 : f32 to vector<8x32xf32>
    %112 = arith.addf %110, %111 : vector<8x32xf32>
    %cst_44 = arith.constant 5.000000e-01 : f32
    %113 = vector.broadcast %cst_44 : f32 to vector<8x32xf32>
    %114 = arith.mulf %113, %112 : vector<8x32xf32>
    %115 = arith.mulf %108, %89 : vector<8x32xf32>
    %116 = arith.mulf %103, %109 : vector<8x32xf32>
    %117 = arith.addf %115, %116 : vector<8x32xf32>
    %118 = math.tanh %117 : vector<8x32xf32>
    %119 = arith.mulf %114, %118 : vector<8x32xf32>
    %c24 = arith.constant 24 : index
    %c0_45 = arith.constant 0 : index
    %120 = vector.load %arg8[%c24, %c0_45] : memref<64x32xf32, #tpu.memory_space<vmem>>, vector<8x32xf32>
    tpu.vector_store %arg8[%c24, %c0_45], %119 {strides = array<i32>} : memref<64x32xf32, #tpu.memory_space<vmem>>, vector<8x32xf32>,
    %121 = vector.extract_strided_slice %6 {offsets = [32, 0], sizes = [8, 128], strides = [1, 1]} : vector<64x128xf32> to vector<8x128xf32>
    %cst_46 = arith.constant dense<0.000000e+00> : vector<8x128xf32>
    %122 = tpu.matmul %119, %1, %cst_46 {dimension_numbers = #tpu.dot_dimension_numbers<[1], [0], [0], [1], [0, 0, 1, 1], [], []>} : vector<8x32xf32>, vector<32x128xf32>, vector<8x128xf32> -> vector<8x128xf32>
    %123 = arith.addf %121, %122 : vector<8x128xf32>
    %124 = vector.broadcast %2 : vector<1x128xf32> to vector<8x128xf32>
    %125 = arith.addf %123, %124 : vector<8x128xf32>
    %126 = math.tanh %125 : vector<8x128xf32>
    %127 = vector.extract_strided_slice %126 {offsets = [0, 0], sizes = [8, 32], strides = [1, 1]} : vector<8x128xf32> to vector<8x32xf32>
    %cst_47 = arith.constant 1.000000e+00 : f32
    %128 = vector.broadcast %cst_47 : f32 to vector<8x32xf32>
    %129 = arith.addf %127, %128 : vector<8x32xf32>
    %cst_48 = arith.constant 5.000000e-01 : f32
    %130 = vector.broadcast %cst_48 : f32 to vector<8x32xf32>
    %131 = arith.mulf %130, %129 : vector<8x32xf32>
    %132 = vector.extract_strided_slice %126 {offsets = [0, 32], sizes = [8, 32], strides = [1, 1]} : vector<8x128xf32> to vector<8x32xf32>
    %cst_49 = arith.constant 1.000000e+00 : f32
    %133 = vector.broadcast %cst_49 : f32 to vector<8x32xf32>
    %134 = arith.addf %132, %133 : vector<8x32xf32>
    %cst_50 = arith.constant 5.000000e-01 : f32
    %135 = vector.broadcast %cst_50 : f32 to vector<8x32xf32>
    %136 = arith.mulf %135, %134 : vector<8x32xf32>
    %137 = vector.extract_strided_slice %126 {offsets = [0, 64], sizes = [8, 32], strides = [1, 1]} : vector<8x128xf32> to vector<8x32xf32>
    %138 = vector.extract_strided_slice %126 {offsets = [0, 96], sizes = [8, 32], strides = [1, 1]} : vector<8x128xf32> to vector<8x32xf32>
    %cst_51 = arith.constant 1.000000e+00 : f32
    %139 = vector.broadcast %cst_51 : f32 to vector<8x32xf32>
    %140 = arith.addf %138, %139 : vector<8x32xf32>
    %cst_52 = arith.constant 5.000000e-01 : f32
    %141 = vector.broadcast %cst_52 : f32 to vector<8x32xf32>
    %142 = arith.mulf %141, %140 : vector<8x32xf32>
    %143 = arith.mulf %136, %117 : vector<8x32xf32>
    %144 = arith.mulf %131, %137 : vector<8x32xf32>
    %145 = arith.addf %143, %144 : vector<8x32xf32>
    %146 = math.tanh %145 : vector<8x32xf32>
    %147 = arith.mulf %142, %146 : vector<8x32xf32>
    %c32 = arith.constant 32 : index
    %c0_53 = arith.constant 0 : index
    %148 = vector.load %arg8[%c32, %c0_53] : memref<64x32xf32, #tpu.memory_space<vmem>>, vector<8x32xf32>
    tpu.vector_store %arg8[%c32, %c0_53], %147 {strides = array<i32>} : memref<64x32xf32, #tpu.memory_space<vmem>>, vector<8x32xf32>,
    %149 = vector.extract_strided_slice %6 {offsets = [40, 0], sizes = [8, 128], strides = [1, 1]} : vector<64x128xf32> to vector<8x128xf32>
    %cst_54 = arith.constant dense<0.000000e+00> : vector<8x128xf32>
    %150 = tpu.matmul %147, %1, %cst_54 {dimension_numbers = #tpu.dot_dimension_numbers<[1], [0], [0], [1], [0, 0, 1, 1], [], []>} : vector<8x32xf32>, vector<32x128xf32>, vector<8x128xf32> -> vector<8x128xf32>
    %151 = arith.addf %149, %150 : vector<8x128xf32>
    %152 = vector.broadcast %2 : vector<1x128xf32> to vector<8x128xf32>
    %153 = arith.addf %151, %152 : vector<8x128xf32>
    %154 = math.tanh %153 : vector<8x128xf32>
    %155 = vector.extract_strided_slice %154 {offsets = [0, 0], sizes = [8, 32], strides = [1, 1]} : vector<8x128xf32> to vector<8x32xf32>
    %cst_55 = arith.constant 1.000000e+00 : f32
    %156 = vector.broadcast %cst_55 : f32 to vector<8x32xf32>
    %157 = arith.addf %155, %156 : vector<8x32xf32>
    %cst_56 = arith.constant 5.000000e-01 : f32
    %158 = vector.broadcast %cst_56 : f32 to vector<8x32xf32>
    %159 = arith.mulf %158, %157 : vector<8x32xf32>
    %160 = vector.extract_strided_slice %154 {offsets = [0, 32], sizes = [8, 32], strides = [1, 1]} : vector<8x128xf32> to vector<8x32xf32>
    %cst_57 = arith.constant 1.000000e+00 : f32
    %161 = vector.broadcast %cst_57 : f32 to vector<8x32xf32>
    %162 = arith.addf %160, %161 : vector<8x32xf32>
    %cst_58 = arith.constant 5.000000e-01 : f32
    %163 = vector.broadcast %cst_58 : f32 to vector<8x32xf32>
    %164 = arith.mulf %163, %162 : vector<8x32xf32>
    %165 = vector.extract_strided_slice %154 {offsets = [0, 64], sizes = [8, 32], strides = [1, 1]} : vector<8x128xf32> to vector<8x32xf32>
    %166 = vector.extract_strided_slice %154 {offsets = [0, 96], sizes = [8, 32], strides = [1, 1]} : vector<8x128xf32> to vector<8x32xf32>
    %cst_59 = arith.constant 1.000000e+00 : f32
    %167 = vector.broadcast %cst_59 : f32 to vector<8x32xf32>
    %168 = arith.addf %166, %167 : vector<8x32xf32>
    %cst_60 = arith.constant 5.000000e-01 : f32
    %169 = vector.broadcast %cst_60 : f32 to vector<8x32xf32>
    %170 = arith.mulf %169, %168 : vector<8x32xf32>
    %171 = arith.mulf %164, %145 : vector<8x32xf32>
    %172 = arith.mulf %159, %165 : vector<8x32xf32>
    %173 = arith.addf %171, %172 : vector<8x32xf32>
    %174 = math.tanh %173 : vector<8x32xf32>
    %175 = arith.mulf %170, %174 : vector<8x32xf32>
    %c40 = arith.constant 40 : index
    %c0_61 = arith.constant 0 : index
    %176 = vector.load %arg8[%c40, %c0_61] : memref<64x32xf32, #tpu.memory_space<vmem>>, vector<8x32xf32>
    tpu.vector_store %arg8[%c40, %c0_61], %175 {strides = array<i32>} : memref<64x32xf32, #tpu.memory_space<vmem>>, vector<8x32xf32>,
    %177 = vector.extract_strided_slice %6 {offsets = [48, 0], sizes = [8, 128], strides = [1, 1]} : vector<64x128xf32> to vector<8x128xf32>
    %cst_62 = arith.constant dense<0.000000e+00> : vector<8x128xf32>
    %178 = tpu.matmul %175, %1, %cst_62 {dimension_numbers = #tpu.dot_dimension_numbers<[1], [0], [0], [1], [0, 0, 1, 1], [], []>} : vector<8x32xf32>, vector<32x128xf32>, vector<8x128xf32> -> vector<8x128xf32>
    %179 = arith.addf %177, %178 : vector<8x128xf32>
    %180 = vector.broadcast %2 : vector<1x128xf32> to vector<8x128xf32>
    %181 = arith.addf %179, %180 : vector<8x128xf32>
    %182 = math.tanh %181 : vector<8x128xf32>
    %183 = vector.extract_strided_slice %182 {offsets = [0, 0], sizes = [8, 32], strides = [1, 1]} : vector<8x128xf32> to vector<8x32xf32>
    %cst_63 = arith.constant 1.000000e+00 : f32
    %184 = vector.broadcast %cst_63 : f32 to vector<8x32xf32>
    %185 = arith.addf %183, %184 : vector<8x32xf32>
    %cst_64 = arith.constant 5.000000e-01 : f32
    %186 = vector.broadcast %cst_64 : f32 to vector<8x32xf32>
    %187 = arith.mulf %186, %185 : vector<8x32xf32>
    %188 = vector.extract_strided_slice %182 {offsets = [0, 32], sizes = [8, 32], strides = [1, 1]} : vector<8x128xf32> to vector<8x32xf32>
    %cst_65 = arith.constant 1.000000e+00 : f32
    %189 = vector.broadcast %cst_65 : f32 to vector<8x32xf32>
    %190 = arith.addf %188, %189 : vector<8x32xf32>
    %cst_66 = arith.constant 5.000000e-01 : f32
    %191 = vector.broadcast %cst_66 : f32 to vector<8x32xf32>
    %192 = arith.mulf %191, %190 : vector<8x32xf32>
    %193 = vector.extract_strided_slice %182 {offsets = [0, 64], sizes = [8, 32], strides = [1, 1]} : vector<8x128xf32> to vector<8x32xf32>
    %194 = vector.extract_strided_slice %182 {offsets = [0, 96], sizes = [8, 32], strides = [1, 1]} : vector<8x128xf32> to vector<8x32xf32>
    %cst_67 = arith.constant 1.000000e+00 : f32
    %195 = vector.broadcast %cst_67 : f32 to vector<8x32xf32>
    %196 = arith.addf %194, %195 : vector<8x32xf32>
    %cst_68 = arith.constant 5.000000e-01 : f32
    %197 = vector.broadcast %cst_68 : f32 to vector<8x32xf32>
    %198 = arith.mulf %197, %196 : vector<8x32xf32>
    %199 = arith.mulf %192, %173 : vector<8x32xf32>
    %200 = arith.mulf %187, %193 : vector<8x32xf32>
    %201 = arith.addf %199, %200 : vector<8x32xf32>
    %202 = math.tanh %201 : vector<8x32xf32>
    %203 = arith.mulf %198, %202 : vector<8x32xf32>
    %c48 = arith.constant 48 : index
    %c0_69 = arith.constant 0 : index
    %204 = vector.load %arg8[%c48, %c0_69] : memref<64x32xf32, #tpu.memory_space<vmem>>, vector<8x32xf32>
    tpu.vector_store %arg8[%c48, %c0_69], %203 {strides = array<i32>} : memref<64x32xf32, #tpu.memory_space<vmem>>, vector<8x32xf32>,
    %205 = vector.extract_strided_slice %6 {offsets = [56, 0], sizes = [8, 128], strides = [1, 1]} : vector<64x128xf32> to vector<8x128xf32>
    %cst_70 = arith.constant dense<0.000000e+00> : vector<8x128xf32>
    %206 = tpu.matmul %203, %1, %cst_70 {dimension_numbers = #tpu.dot_dimension_numbers<[1], [0], [0], [1], [0, 0, 1, 1], [], []>} : vector<8x32xf32>, vector<32x128xf32>, vector<8x128xf32> -> vector<8x128xf32>
    %207 = arith.addf %205, %206 : vector<8x128xf32>
    %208 = vector.broadcast %2 : vector<1x128xf32> to vector<8x128xf32>
    %209 = arith.addf %207, %208 : vector<8x128xf32>
    %210 = math.tanh %209 : vector<8x128xf32>
    %211 = vector.extract_strided_slice %210 {offsets = [0, 0], sizes = [8, 32], strides = [1, 1]} : vector<8x128xf32> to vector<8x32xf32>
    %cst_71 = arith.constant 1.000000e+00 : f32
    %212 = vector.broadcast %cst_71 : f32 to vector<8x32xf32>
    %213 = arith.addf %211, %212 : vector<8x32xf32>
    %cst_72 = arith.constant 5.000000e-01 : f32
    %214 = vector.broadcast %cst_72 : f32 to vector<8x32xf32>
    %215 = arith.mulf %214, %213 : vector<8x32xf32>
    %216 = vector.extract_strided_slice %210 {offsets = [0, 32], sizes = [8, 32], strides = [1, 1]} : vector<8x128xf32> to vector<8x32xf32>
    %cst_73 = arith.constant 1.000000e+00 : f32
    %217 = vector.broadcast %cst_73 : f32 to vector<8x32xf32>
    %218 = arith.addf %216, %217 : vector<8x32xf32>
    %cst_74 = arith.constant 5.000000e-01 : f32
    %219 = vector.broadcast %cst_74 : f32 to vector<8x32xf32>
    %220 = arith.mulf %219, %218 : vector<8x32xf32>
    %221 = vector.extract_strided_slice %210 {offsets = [0, 64], sizes = [8, 32], strides = [1, 1]} : vector<8x128xf32> to vector<8x32xf32>
    %222 = vector.extract_strided_slice %210 {offsets = [0, 96], sizes = [8, 32], strides = [1, 1]} : vector<8x128xf32> to vector<8x32xf32>
    %cst_75 = arith.constant 1.000000e+00 : f32
    %223 = vector.broadcast %cst_75 : f32 to vector<8x32xf32>
    %224 = arith.addf %222, %223 : vector<8x32xf32>
    %cst_76 = arith.constant 5.000000e-01 : f32
    %225 = vector.broadcast %cst_76 : f32 to vector<8x32xf32>
    %226 = arith.mulf %225, %224 : vector<8x32xf32>
    %227 = arith.mulf %220, %201 : vector<8x32xf32>
    %228 = arith.mulf %215, %221 : vector<8x32xf32>
    %229 = arith.addf %227, %228 : vector<8x32xf32>
    %230 = math.tanh %229 : vector<8x32xf32>
    %231 = arith.mulf %226, %230 : vector<8x32xf32>
    %c56 = arith.constant 56 : index
    %c0_77 = arith.constant 0 : index
    %232 = vector.load %arg8[%c56, %c0_77] : memref<64x32xf32, #tpu.memory_space<vmem>>, vector<8x32xf32>
    tpu.vector_store %arg8[%c56, %c0_77], %231 {strides = array<i32>} : memref<64x32xf32, #tpu.memory_space<vmem>>, vector<8x32xf32>,
    %c0_78 = arith.constant 0 : index
    %c0_79 = arith.constant 0 : index
    %233 = vector.load %arg8[%c0_78, %c0_79] : memref<64x32xf32, #tpu.memory_space<vmem>>, vector<64x32xf32>
    %cst_80 = arith.constant dense<0.000000e+00> : vector<64x8xf32>
    %234 = tpu.matmul %233, %3, %cst_80 {dimension_numbers = #tpu.dot_dimension_numbers<[1], [0], [0], [1], [0, 0, 1, 1], [], []>} : vector<64x32xf32>, vector<32x8xf32>, vector<64x8xf32> -> vector<64x8xf32>
    %235 = vector.broadcast %4 : vector<1x8xf32> to vector<64x8xf32>
    %236 = arith.addf %234, %235 : vector<64x8xf32>
    %cst_81 = arith.constant dense<0xFF800000> : vector<64xf32>
    %237 = vector.multi_reduction <maximumf>, %236, %cst_81 [1] : vector<64x8xf32> to vector<64xf32>
    %238 = vector.shape_cast %237 : vector<64xf32> to vector<64x1xf32>
    %239 = vector.broadcast %238 : vector<64x1xf32> to vector<64x8xf32>
    %240 = arith.subf %236, %239 : vector<64x8xf32>
    %241 = math.exp %240 : vector<64x8xf32>
    %cst_82 = arith.constant dense<0.000000e+00> : vector<64xf32>
    %242 = vector.multi_reduction <add>, %241, %cst_82 [1] : vector<64x8xf32> to vector<64xf32>
    %243 = vector.shape_cast %242 : vector<64xf32> to vector<64x1xf32>
    %244 = math.log %243 : vector<64x1xf32>
    %245 = vector.broadcast %244 : vector<64x1xf32> to vector<64x8xf32>
    %246 = arith.subf %240, %245 : vector<64x8xf32>
    %c0_83 = arith.constant 0 : index
    %c0_84 = arith.constant 0 : index
    %247 = vector.load %arg7[%c0_83, %c0_84] : memref<64x8xf32, #tpu.memory_space<vmem>>, vector<64x8xf32>
    tpu.vector_store %arg7[%c0_83, %c0_84], %246 {strides = array<i32>} : memref<64x8xf32, #tpu.memory_space<vmem>>, vector<64x8xf32>,
    return
  }
  func.func @transform_0(%arg0: i32) -> (i32, i32) {
    %c0_i32 = arith.constant 0 : i32
    %c0_i32_0 = arith.constant 0 : i32
    return %arg0, %c0_i32 : i32, i32
  }
  func.func @transform_1(%arg0: i32) -> (i32, i32) {
    %c0_i32 = arith.constant 0 : i32
    %c0_i32_0 = arith.constant 0 : i32
    %c0_i32_1 = arith.constant 0 : i32
    return %c0_i32, %c0_i32_0 : i32, i32
  }
  func.func @transform_2(%arg0: i32) -> (i32, i32) {
    %c0_i32 = arith.constant 0 : i32
    %c0_i32_0 = arith.constant 0 : i32
    %c0_i32_1 = arith.constant 0 : i32
    return %c0_i32, %c0_i32_0 : i32, i32
  }
  func.func @transform_3(%arg0: i32) -> (i32, i32) {
    %c0_i32 = arith.constant 0 : i32
    %c0_i32_0 = arith.constant 0 : i32
    %c0_i32_1 = arith.constant 0 : i32
    return %c0_i32, %c0_i32_0 : i32, i32
  }
  func.func @transform_4(%arg0: i32) -> (i32, i32) {
    %c0_i32 = arith.constant 0 : i32
    %c0_i32_0 = arith.constant 0 : i32
    %c0_i32_1 = arith.constant 0 : i32
    return %c0_i32, %c0_i32_0 : i32, i32
  }
  func.func @transform_5(%arg0: i32) -> (i32, i32) {
    %c0_i32 = arith.constant 0 : i32
    %c0_i32_0 = arith.constant 0 : i32
    %c0_i32_1 = arith.constant 0 : i32
    return %c0_i32, %c0_i32_0 : i32, i32
  }
  func.func @transform_6(%arg0: i32) -> (i32, i32) {
    %c0_i32 = arith.constant 0 : i32
    %c0_i32_0 = arith.constant 0 : i32
    return %arg0, %c0_i32 : i32, i32
  }
}

</mosaic_0001>

<llo_original>
// kernel: tpu_custom_call.1
$region0: #{tpu_custom_call.1}
  #allocation0 [shape = 'u32[]', space=smem, size = 0x4, offset = 0x4, fixed_abs, tag = 'smem constant byte address 0x4 - core index']
  #allocation1 [shape = 'u32[144,128]{1,0:T(1,128)}', space=vmem, size = 0x12000, scoped, tag = 'internal scratch']
  #allocation2 [shape = 'f32[64,32]{1,0:T(8,128)}', space=vmem, size = 0x8000, scoped, tag = 'scratch operand']
  %s0 = inlined_call_operand.vmem [shape: f32[128,24], index: 0, kind: input, shape index: {}]
  %s1 = inlined_call_operand.vmem [shape: f32[24,128], index: 1, kind: input, shape index: {}]
  %s2 = inlined_call_operand.vmem [shape: f32[32,128], index: 2, kind: input, shape index: {}]
  %s3 = inlined_call_operand.vmem [shape: f32[1,128], index: 3, kind: input, shape index: {}]
  %s4 = inlined_call_operand.vmem [shape: f32[32,8], index: 4, kind: input, shape index: {}]
  %s5 = inlined_call_operand.vmem [shape: f32[1,8], index: 5, kind: input, shape index: {}]
  %s6 = inlined_call_operand.vmem [shape: f32[128,8], index: 6, kind: output, shape index: {}]
  %s7 = sld [smem:[#allocation0]]
  $region57: #{tpu_custom_call.1} parent=0
    _
  %s9 = ssub.s32 1, %s7
  %s10 = scalar_select 0, %s9, %s7
  loop: start=0, step=1, limit=4
  $region2: #{tpu_custom_call.1} parent=0 // loop_pre_header
    _
  $region3: #{tpu_custom_call.1} parent=0 // loop_header
    %s12 = sphi 0, %s16
    %p13 = scmp.ge.s32.totalorder %s12, 4
    %s22 = sphi 0, %s24
    %s25 = sphi 0, %s22
    %s26 = sphi 0, %s25
    %s42 = sphi 0, %s26
    %s46 = sphi 0, %s46
    %s48 = sphi 0, %s46
    %s49 = sphi 0, %s48
    %s63 = sphi 0, %s49
    %s67 = sphi 0, %s67
    %s69 = sphi 0, %s67
    %s70 = sphi 0, %s69
    %s84 = sphi 0, %s70
    %s88 = sphi 0, %s88
    %s90 = sphi 0, %s88
    %s91 = sphi 0, %s90
    %s105 = sphi 0, %s91
    %s109 = sphi 0, %s109
    %s111 = sphi 0, %s109
    %s112 = sphi 0, %s111
    %s126 = sphi 0, %s112
    %s130 = sphi 0, %s130
    %s132 = sphi 0, %s130
    %s133 = sphi 0, %s132
    %s147 = sphi 0, %s133
    %s153 = sphi 0, %s155
    %s156 = sphi 0, %s153
    %s157 = sphi 0, %s156
    %s173 = sphi 0, %s157
  $region4: #{tpu_custom_call.1} parent=0 // loop_header_branch
    %15 = sbr.rel (%p13) target = $region8
  $region5: #{tpu_custom_call.1} parent=0 // loop_body
    %s17 = ssub.s32 %s12, 1
    %s18 = ssub.s32 %s12, 2
    %s19 = sadd.s32 %s12, 1
    %s20 = ssub.s32 %s12, %s19
    %p21 = scmp.eq.s32.totalorder %s20, 0
    %s23 = sadd.s32 %s22, 1
    %s24 = scalar_select %p21, %s22, %s23
    %p27 = pneg %p21
    %p28 = scmp.eq.s32.totalorder %s12, 1
    %p29 = por %p27, %p28
    %p30 = scmp.ne.s32.totalorder %s22, %s25
    %p31 = scmp.eq.s32.totalorder %s12, 0
    %p32 = por %p30, %p31
    %p33 = scmp.ne.s32.totalorder %s22, %s25
    %p34 = scmp.eq.s32.totalorder %s17, 1
    %p35 = por %p33, %p34
    %p36 = scmp.ne.s32.totalorder %s25, %s26
    %p37 = scmp.eq.s32.totalorder %s17, 0
    %p38 = por %p36, %p37
    %p39 = scmp.ne.s32.totalorder %s25, %s26
    %p40 = scmp.eq.s32.totalorder %s18, 1
    %p41 = por %p39, %p40
    %p43 = scmp.ne.s32.totalorder %s26, %s42
    %p44 = scmp.eq.s32.totalorder %s18, 0
    %p45 = por %p43, %p44
    %s47 = sadd.s32 %s46, 1
    %p50 = scmp.eq.s32.totalorder %s12, 1
    %p51 = scmp.ne.s32.totalorder %s46, %s48
    %p52 = scmp.eq.s32.totalorder %s12, 0
    %p53 = por %p51, %p52
    %p54 = scmp.ne.s32.totalorder %s46, %s48
    %p55 = scmp.eq.s32.totalorder %s17, 1
    %p56 = por %p54, %p55
    %p57 = scmp.ne.s32.totalorder %s48, %s49
    %p58 = scmp.eq.s32.totalorder %s17, 0
    %p59 = por %p57, %p58
    %p60 = scmp.ne.s32.totalorder %s48, %s49
    %p61 = scmp.eq.s32.totalorder %s18, 1
    %p62 = por %p60, %p61
    %p64 = scmp.ne.s32.totalorder %s49, %s63
    %p65 = scmp.eq.s32.totalorder %s18, 0
    %p66 = por %p64, %p65
    %s68 = sadd.s32 %s67, 1
    %p71 = scmp.eq.s32.totalorder %s12, 1
    %p72 = scmp.ne.s32.totalorder %s67, %s69
    %p73 = scmp.eq.s32.totalorder %s12, 0
    %p74 = por %p72, %p73
    %p75 = scmp.ne.s32.totalorder %s67, %s69
    %p76 = scmp.eq.s32.totalorder %s17, 1
    %p77 = por %p75, %p76
    %p78 = scmp.ne.s32.totalorder %s69, %s70
    %p79 = scmp.eq.s32.totalorder %s17, 0
    %p80 = por %p78, %p79
    %p81 = scmp.ne.s32.totalorder %s69, %s70
    %p82 = scmp.eq.s32.totalorder %s18, 1
    %p83 = por %p81, %p82
    %p85 = scmp.ne.s32.totalorder %s70, %s84
    %p86 = scmp.eq.s32.totalorder %s18, 0
    %p87 = por %p85, %p86
    %s89 = sadd.s32 %s88, 1
    %p92 = scmp.eq.s32.totalorder %s12, 1
    %p93 = scmp.ne.s32.totalorder %s88, %s90
    %p94 = scmp.eq.s32.totalorder %s12, 0
    %p95 = por %p93, %p94
    %p96 = scmp.ne.s32.totalorder %s88, %s90
    %p97 = scmp.eq.s32.totalorder %s17, 1
    %p98 = por %p96, %p97
    %p99 = scmp.ne.s32.totalorder %s90, %s91
    %p100 = scmp.eq.s32.totalorder %s17, 0
    %p101 = por %p99, %p100
    %p102 = scmp.ne.s32.totalorder %s90, %s91
    %p103 = scmp.eq.s32.totalorder %s18, 1
    %p104 = por %p102, %p103
    %p106 = scmp.ne.s32.totalorder %s91, %s105
    %p107 = scmp.eq.s32.totalorder %s18, 0
    %p108 = por %p106, %p107
    %s110 = sadd.s32 %s109, 1
    %p113 = scmp.eq.s32.totalorder %s12, 1
    %p114 = scmp.ne.s32.totalorder %s109, %s111
    %p115 = scmp.eq.s32.totalorder %s12, 0
    %p116 = por %p114, %p115
    %p117 = scmp.ne.s32.totalorder %s109, %s111
    %p118 = scmp.eq.s32.totalorder %s17, 1
    %p119 = por %p117, %p118
    %p120 = scmp.ne.s32.totalorder %s111, %s112
    %p121 = scmp.eq.s32.totalorder %s17, 0
    %p122 = por %p120, %p121
    %p123 = scmp.ne.s32.totalorder %s111, %s112
    %p124 = scmp.eq.s32.totalorder %s18, 1
    %p125 = por %p123, %p124
    %p127 = scmp.ne.s32.totalorder %s112, %s126
    %p128 = scmp.eq.s32.totalorder %s18, 0
    %p129 = por %p127, %p128
    %s131 = sadd.s32 %s130, 1
    %p134 = scmp.eq.s32.totalorder %s12, 1
    %p135 = scmp.ne.s32.totalorder %s130, %s132
    %p136 = scmp.eq.s32.totalorder %s12, 0
    %p137 = por %p135, %p136
    %p138 = scmp.ne.s32.totalorder %s130, %s132
    %p139 = scmp.eq.s32.totalorder %s17, 1
    %p140 = por %p138, %p139
    %p141 = scmp.ne.s32.totalorder %s132, %s133
    %p142 = scmp.eq.s32.totalorder %s17, 0
    %p143 = por %p141, %p142
    %p144 = scmp.ne.s32.totalorder %s132, %s133
    %p145 = scmp.eq.s32.totalorder %s18, 1
    %p146 = por %p144, %p145
    %p148 = scmp.ne.s32.totalorder %s133, %s147
    %p149 = scmp.eq.s32.totalorder %s18, 0
    %p150 = por %p148, %p149
    %s151 = ssub.s32 %s12, %s19
    %p152 = scmp.eq.s32.totalorder %s151, 0
    %s154 = sadd.s32 %s153, 1
    %s155 = scalar_select %p152, %s153, %s154
    %p158 = pneg %p152
    %p159 = scmp.eq.s32.totalorder %s12, 1
    %p160 = por %p158, %p159
    %p161 = scmp.ne.s32.totalorder %s153, %s156
    %p162 = scmp.eq.s32.totalorder %s12, 0
    %p163 = por %p161, %p162
    %p164 = scmp.ne.s32.totalorder %s153, %s156
    %p165 = scmp.eq.s32.totalorder %s17, 1
    %p166 = por %p164, %p165
    %p167 = scmp.ne.s32.totalorder %s156, %s157
    %p168 = scmp.eq.s32.totalorder %s17, 0
    %p169 = por %p167, %p168
    %p170 = scmp.ne.s32.totalorder %s156, %s157
    %p171 = scmp.eq.s32.totalorder %s18, 1
    %p172 = por %p170, %p171
    %p174 = scmp.ne.s32.totalorder %s157, %s173
    %p175 = scmp.eq.s32.totalorder %s18, 0
    %p176 = por %p174, %p175
    %p177 = scmp.le.s32.totalorder 1, %s12
    %p178 = scmp.lt.s32.totalorder %s12, 3
    %p179 = pnand %p177, %p178
    %p180 = pneg %p179
    // Predicated region
    $region9: #{tpu_custom_call.1} parent=5 // pred_check
      _
    $region10: #{tpu_custom_call.1} parent=5 // pred_check_branch
      %182 = sbr.rel (%p179) target = $region12
    $region11: #{tpu_custom_call.1} parent=5 // pred_region
      %s183 = ssub.s32 %s12, 1
      // Predicated region
      $region13: #{tpu_custom_call.1} parent=11 // pred_check
        %p184 = pneg %p59
      $region14: #{tpu_custom_call.1} parent=11 // pred_check_branch
        %186 = sbr.rel (%p184) target = $region16
      $region15: #{tpu_custom_call.1} parent=11 // pred_region
        _
      $region16: #{tpu_custom_call.1} parent=11 // pred_fallthru
        _
      // Predicated region
      $region17: #{tpu_custom_call.1} parent=11 // pred_check
        %p187 = pneg %p80
      $region18: #{tpu_custom_call.1} parent=11 // pred_check_branch
        %189 = sbr.rel (%p187) target = $region20
      $region19: #{tpu_custom_call.1} parent=11 // pred_region
        _
      $region20: #{tpu_custom_call.1} parent=11 // pred_fallthru
        _
      // Predicated region
      $region21: #{tpu_custom_call.1} parent=11 // pred_check
        %p190 = pneg %p101
      $region22: #{tpu_custom_call.1} parent=11 // pred_check_branch
        %192 = sbr.rel (%p190) target = $region24
      $region23: #{tpu_custom_call.1} parent=11 // pred_region
        _
      $region24: #{tpu_custom_call.1} parent=11 // pred_fallthru
        _
      // Predicated region
      $region25: #{tpu_custom_call.1} parent=11 // pred_check
        %p193 = pneg %p122
      $region26: #{tpu_custom_call.1} parent=11 // pred_check_branch
        %195 = sbr.rel (%p193) target = $region28
      $region27: #{tpu_custom_call.1} parent=11 // pred_region
        _
      $region28: #{tpu_custom_call.1} parent=11 // pred_fallthru
        _
      // Predicated region
      $region29: #{tpu_custom_call.1} parent=11 // pred_check
        %p196 = pneg %p143
      $region30: #{tpu_custom_call.1} parent=11 // pred_check_branch
        %198 = sbr.rel (%p196) target = $region32
      $region31: #{tpu_custom_call.1} parent=11 // pred_region
        _
      $region32: #{tpu_custom_call.1} parent=11 // pred_fallthru
        _
    $region12: #{tpu_custom_call.1} parent=5 // pred_fallthru
      _
    %p199 = scmp.lt.s32.totalorder %s12, 2
    // Predicated region
    $region33: #{tpu_custom_call.1} parent=5 // pred_check
      %p200 = pneg %p199
    $region34: #{tpu_custom_call.1} parent=5 // pred_check_branch
      %202 = sbr.rel (%p200) target = $region36
    $region35: #{tpu_custom_call.1} parent=5 // pred_region
      // Predicated region
      $region37: #{tpu_custom_call.1} parent=35 // pred_check
        %p203 = pneg %p32
      $region38: #{tpu_custom_call.1} parent=35 // pred_check_branch
        %205 = sbr.rel (%p203) target = $region40
      $region39: #{tpu_custom_call.1} parent=35 // pred_region
        %s206 = smul.u32 8, %s12
        %p207 = scmp.lt.s32.totalorder %s206, 15
        %s208 = scalar_select %p207, %s206, 15
        %s209 = smul.addr %s208, 8
        %s210 = scalar_lea.vmem %s0, %s209
        %s211 = smul.u32 8, %s12
      $region40: #{tpu_custom_call.1} parent=35 // pred_fallthru
        _
    $region36: #{tpu_custom_call.1} parent=5 // pred_fallthru
      _
    %p212 = scmp.le.s32.totalorder 1, %s12
    %p213 = scmp.lt.s32.totalorder %s12, 3
    %p214 = pnand %p212, %p213
    %p215 = pneg %p214
    // Predicated region
    $region41: #{tpu_custom_call.1} parent=5 // pred_check
      _
    $region42: #{tpu_custom_call.1} parent=5 // pred_check_branch
      %217 = sbr.rel (%p214) target = $region44
    $region43: #{tpu_custom_call.1} parent=5 // pred_region
      %s218 = ssub.s32 %s12, 1
      %s219 = smul.u32 8, %s17
      %p220 = scmp.lt.s32.totalorder %s219, 15
      %s221 = scalar_select %p220, %s219, 15
      %s222 = smul.addr %s221, 8
      %s223 = scalar_lea.vmem %s0, %s222
      %p224 = pneg %p38
      %p225 = pneg %p35
      %p226 = pneg %p59
      %p227 = pneg %p56
      %p228 = pneg %p80
      %p229 = pneg %p77
      %p230 = pneg %p101
      %p231 = pneg %p98
      %p232 = pneg %p122
      %p233 = pneg %p119
      %p234 = pneg %p143
      %p235 = pneg %p140
      %p236 = pneg %p169
      %p237 = pneg %p166
      %s238 = smul.u32 8, %s17
      %p239 = scmp.lt.s32.totalorder %s238, 15
      %s240 = scalar_select %p239, %s238, 15
      %s241 = smul.addr %s240, 8
      %s242 = scalar_lea.vmem %s6, %s241
      %s243 = smul.u32 8, %s17
      %p244 = scmp.lt.s32.totalorder %s243, 15
      %s245 = scalar_select %p244, %s243, 15
      %s246 = smul.addr %s245, 8
      %s247 = scalar_lea.vmem %s0, %s246
      %s248 = smul.u32 8, %s17
      %s249 = smul.u32 8, %s17
      %p250 = scmp.lt.s32.totalorder %s249, 15
      %s251 = scalar_select %p250, %s249, 15
      %s252 = smul.addr %s251, 8
      %s253 = scalar_lea.vmem %s6, %s252
      %s254 = smul.u32 8, %s17
      %v255 = vld [vmem:[%s1] sm:$0xff]
      %v256 = vld [vmem:[%s1 + $0x8] sm:$0xff]
      %v257 = vld [vmem:[%s1 + $0x10] sm:$0xff]
      %v258 = vld [vmem:[%s2] sm:$0xff]
      %v259 = vld [vmem:[%s2 + $0x8] sm:$0xff]
      %v260 = vld [vmem:[%s2 + $0x10] sm:$0xff]
      %v261 = vld [vmem:[%s2 + $0x18] sm:$0xff]
      %v262 = vld [vmem:[%s3] sm:$0x1]
      %v263 = vld [vmem:[%s4] sm:$0xff]
      %v264 = vld [vmem:[%s4 + $0x8] sm:$0xff]
      %v265 = vld [vmem:[%s4 + $0x10] sm:$0xff]
      %v266 = vld [vmem:[%s4 + $0x18] sm:$0xff]
      %v267 = vld [vmem:[%s5] sm:$0x1]
      %v268 = vld [vmem:[%s247] sm:$0xff]
      %v269 = vld [vmem:[%s247 + $0x8] sm:$0xff]
      %v270 = vld [vmem:[%s247 + $0x10] sm:$0xff]
      %v271 = vld [vmem:[%s247 + $0x18] sm:$0xff]
      %v272 = vld [vmem:[%s247 + $0x20] sm:$0xff]
      %v273 = vld [vmem:[%s247 + $0x28] sm:$0xff]
      %v274 = vld [vmem:[%s247 + $0x30] sm:$0xff]
      %v275 = vld [vmem:[%s247 + $0x38] sm:$0xff]
      %vm276 = vcmask 195584
      %v278 = vsel %vm276, %v268, 0
      %v281 = vsel %vm276, %v269, 0
      %v284 = vsel %vm276, %v270, 0
      %v287 = vsel %vm276, %v271, 0
      %v290 = vsel %vm276, %v272, 0
      %v293 = vsel %vm276, %v273, 0
      %v296 = vsel %vm276, %v274, 0
      %v299 = vsel %vm276, %v275, 0
      %301 = vmatprep.subr.mxu0 0.0
      %302 = vmatpush1.msra.mxu0 %v255
      %303 = vmatprep.subr.mxu0 0.0
      %304 = vmatpush1.msra.mxu0 %v256
      %305 = vmatprep.subr.mxu0 0.0
      %306 = vmatpush1.msra.mxu0 %v257
      %307 = vmatprep.subr.mxu0 0.0
      %308 = vmatpush1.msra.mxu0 0.0
      %309 = vmatprep.subr.mxu0 0.0
      %310 = vmatpush1.msra.mxu0 0.0
      %311 = vmatprep.subr.mxu0 0.0
      %312 = vmatpush1.msra.mxu0 0.0
      %313 = vmatprep.subr.mxu0 0.0
      %314 = vmatpush1.msra.mxu0 0.0
      %315 = vmatprep.subr.mxu0 0.0
      %316 = vmatpush1.msra.mxu0 0.0
      %317 = vmatprep.subr.mxu0 0.0
      %318 = vmatpush1.msra.mxu0 0.0
      %319 = vmatprep.subr.mxu0 0.0
      %320 = vmatpush1.msra.mxu0 0.0
      %321 = vmatprep.subr.mxu0 0.0
      %322 = vmatpush1.msra.mxu0 0.0
      %323 = vmatprep.subr.mxu0 0.0
      %324 = vmatpush1.msra.mxu0 0.0
      %325 = vmatprep.subr.mxu0 0.0
      %326 = vmatpush1.msra.mxu0 0.0
      %327 = vmatprep.subr.mxu0 0.0
      %328 = vmatpush1.msra.mxu0 0.0
      %329 = vmatprep.subr.mxu0 0.0
      %330 = vmatpush1.msra.mxu0 0.0
      %331 = vmatprep.subr.mxu0 0.0
      %332 = vmatpush1.msra.mxu0 0.0
      %333 = vmatprep.subr.mxu0 0.0
      %334 = vmatpush1.msra.mxu0 0.0
      %335 = vmatprep.subr.mxu0 0.0
      %336 = vmatpush1.msra.mxu0 0.0
      %337 = vmatprep.subr.mxu0 0.0
      %338 = vmatpush1.msra.mxu0 0.0
      %339 = vmatprep.subr.mxu0 0.0
      %340 = vmatpush1.msra.mxu0 0.0
      %341 = vmatprep.subr.mxu0 0.0
      %342 = vmatpush1.msra.mxu0 0.0
      %343 = vmatprep.subr.mxu0 0.0
      %344 = vmatpush1.msra.mxu0 0.0
      %345 = vmatprep.subr.mxu0 0.0
      %346 = vmatpush1.msra.mxu0 0.0
      %347 = vmatprep.subr.mxu0 0.0
      %348 = vmatpush1.msra.mxu0 0.0
      %349 = vmatprep.subr.mxu0 0.0
      %350 = vmatpush1.msra.mxu0 0.0
      %351 = vmatprep.subr.mxu0 0.0
      %352 = vmatpush1.msra.mxu0 0.0
      %353 = vmatprep.subr.mxu0 0.0
      %354 = vmatpush1.msra.mxu0 0.0
      %355 = vmatprep.subr.mxu0 0.0
      %356 = vmatpush1.msra.mxu0 0.0
      %357 = vmatprep.subr.mxu0 0.0
      %358 = vmatpush1.msra.mxu0 0.0
      %359 = vmatprep.subr.mxu0 0.0
      %360 = vmatpush1.msra.mxu0 0.0
      %361 = vmatprep.subr.mxu0 0.0
      %362 = vmatpush1.msra.mxu0 0.0
      %363 = vmatprep.subr.mxu0 0.0
      %364 = vmatpush1.msra.mxu0 0.0
      %365 = vmatprep.mubr.f32.mxu0 0.0
      %366 = vmatmul.mubr.f32.gmra.mrb[0].mxu0 %v278
      %v367 = vpop.f32.mrb[0].mxu0
      %v368 = vadd.f32 0.0, %v367
      %v369 = vpop.f32.mrb[0].mxu0
      %370 = vmatprep.mubr.f32.mxu0 0.0
      %371 = vmatmul.mubr.f32.gmra.mrb[0].mxu0 %v281
      %v372 = vpop.f32.mrb[0].mxu0
      %v373 = vadd.f32 0.0, %v372
      %v374 = vpop.f32.mrb[0].mxu0
      %375 = vmatprep.mubr.f32.mxu0 0.0
      %376 = vmatmul.mubr.f32.gmra.mrb[0].mxu0 %v284
      %v377 = vpop.f32.mrb[0].mxu0
      %v378 = vadd.f32 0.0, %v377
      %v379 = vpop.f32.mrb[0].mxu0
      %380 = vmatprep.mubr.f32.mxu0 0.0
      %381 = vmatmul.mubr.f32.gmra.mrb[0].mxu0 %v287
      %v382 = vpop.f32.mrb[0].mxu0
      %v383 = vadd.f32 0.0, %v382
      %v384 = vpop.f32.mrb[0].mxu0
      %385 = vmatprep.mubr.f32.mxu0 0.0
      %386 = vmatmul.mubr.f32.gmra.mrb[0].mxu0 %v290
      %v387 = vpop.f32.mrb[0].mxu0
      %v388 = vadd.f32 0.0, %v387
      %v389 = vpop.f32.mrb[0].mxu0
      %390 = vmatprep.mubr.f32.mxu0 0.0
      %391 = vmatmul.mubr.f32.gmra.mrb[0].mxu0 %v293
      %v392 = vpop.f32.mrb[0].mxu0
      %v393 = vadd.f32 0.0, %v392
      %v394 = vpop.f32.mrb[0].mxu0
      %395 = vmatprep.mubr.f32.mxu0 0.0
      %396 = vmatmul.mubr.f32.gmra.mrb[0].mxu0 %v296
      %v397 = vpop.f32.mrb[0].mxu0
      %v398 = vadd.f32 0.0, %v397
      %v399 = vpop.f32.mrb[0].mxu0
      %400 = vmatprep.mubr.f32.mxu0 0.0
      %401 = vmatmul.mubr.f32.gmra.mrb[0].mxu0 %v299
      %v402 = vpop.f32.mrb[0].mxu0
      %v403 = vadd.f32 0.0, %v402
      %v404 = vpop.f32.mrb[0].mxu0
      %405 = vdwg.mxu0
      %vm406 = vcmask 261120
      %v408 = vsel %vm406, 0.0, 0
      %410 = vmatprep.subr.mxu0 0.0
      %411 = vmatpush1.msra.mxu0 %v258
      %412 = vmatprep.subr.mxu0 0.0
      %413 = vmatpush1.msra.mxu0 %v259
      %414 = vmatprep.subr.mxu0 0.0
      %415 = vmatpush1.msra.mxu0 %v260
      %416 = vmatprep.subr.mxu0 0.0
      %417 = vmatpush1.msra.mxu0 %v261
      %418 = vmatprep.subr.mxu0 0.0
      %419 = vmatpush1.msra.mxu0 0.0
      %420 = vmatprep.subr.mxu0 0.0
      %421 = vmatpush1.msra.mxu0 0.0
      %422 = vmatprep.subr.mxu0 0.0
      %423 = vmatpush1.msra.mxu0 0.0
      %424 = vmatprep.subr.mxu0 0.0
      %425 = vmatpush1.msra.mxu0 0.0
      %426 = vmatprep.subr.mxu0 0.0
      %427 = vmatpush1.msra.mxu0 0.0
      %428 = vmatprep.subr.mxu0 0.0
      %429 = vmatpush1.msra.mxu0 0.0
      %430 = vmatprep.subr.mxu0 0.0
      %431 = vmatpush1.msra.mxu0 0.0
      %432 = vmatprep.subr.mxu0 0.0
      %433 = vmatpush1.msra.mxu0 0.0
      %434 = vmatprep.subr.mxu0 0.0
      %435 = vmatpush1.msra.mxu0 0.0
      %436 = vmatprep.subr.mxu0 0.0
      %437 = vmatpush1.msra.mxu0 0.0
      %438 = vmatprep.subr.mxu0 0.0
      %439 = vmatpush1.msra.mxu0 0.0
      %440 = vmatprep.subr.mxu0 0.0
      %441 = vmatpush1.msra.mxu0 0.0
      %442 = vmatprep.subr.mxu0 0.0
      %443 = vmatpush1.msra.mxu0 0.0
      %444 = vmatprep.subr.mxu0 0.0
      %445 = vmatpush1.msra.mxu0 0.0
      %446 = vmatprep.subr.mxu0 0.0
      %447 = vmatpush1.msra.mxu0 0.0
      %448 = vmatprep.subr.mxu0 0.0
      %449 = vmatpush1.msra.mxu0 0.0
      %450 = vmatprep.subr.mxu0 0.0
      %451 = vmatpush1.msra.mxu0 0.0
      %452 = vmatprep.subr.mxu0 0.0
      %453 = vmatpush1.msra.mxu0 0.0
      %454 = vmatprep.subr.mxu0 0.0
      %455 = vmatpush1.msra.mxu0 0.0
      %456 = vmatprep.subr.mxu0 0.0
      %457 = vmatpush1.msra.mxu0 0.0
      %458 = vmatprep.subr.mxu0 0.0
      %459 = vmatpush1.msra.mxu0 0.0
      %460 = vmatprep.subr.mxu0 0.0
      %461 = vmatpush1.msra.mxu0 0.0
      %462 = vmatprep.subr.mxu0 0.0
      %463 = vmatpush1.msra.mxu0 0.0
      %464 = vmatprep.subr.mxu0 0.0
      %465 = vmatpush1.msra.mxu0 0.0
      %466 = vmatprep.subr.mxu0 0.0
      %467 = vmatpush1.msra.mxu0 0.0
      %468 = vmatprep.subr.mxu0 0.0
      %469 = vmatpush1.msra.mxu0 0.0
      %470 = vmatprep.subr.mxu0 0.0
      %471 = vmatpush1.msra.mxu0 0.0
      %472 = vmatprep.subr.mxu0 0.0
      %473 = vmatpush1.msra.mxu0 0.0
      %474 = vmatprep.mubr.f32.mxu0 0.0
      %475 = vmatmul.mubr.f32.gmra.mrb[0].mxu0 %v408
      %v476 = vpop.f32.mrb[0].mxu0
      %v477 = vadd.f32 0.0, %v476
      %v478 = vpop.f32.mrb[0].mxu0
      %479 = vdwg.mxu0
      %v480 = vadd.f32 %v368, %v477
      %v482 = vlaneseq
      %v483 = vshrl.u32 %v482, 7
      %v484 = vsub.s32 0, %v483
      %v485 = vrot.slane %v262, %v484
      %v487 = vadd.f32 %v480, %v485
      %v488 = vtanh.pop %v487
      %v489 = vadd.f32 %v488, 1.0
      %v490 = vmul.f32 %v489, 0.5
      %v491 = vmul.f32 %v490, 0.0
      %493 = vrot.lane.b32.xlu0 %v488, 64
      %v494 = vpop.permute.xlu0 %493
      %v496 = vmul.f32 %v490, %v494
      %498 = vrot.lane.b32.xlu0 %v496, 32
      %v499 = vpop.permute.xlu0 %498
      %v501 = vadd.f32 %v491, %v499
      %v502 = vtanh.pop %v501
      %504 = vrot.lane.b32.xlu0 %v502, 64
      %v505 = vpop.permute.xlu0 %504
      %v507 = vmul.f32 %v490, %v505
      %509 = vrot.lane.b32.xlu0 %v507, 32
      %v510 = vpop.permute.xlu0 %509
      %512 = vst.msk [vmem:[#allocation2] sm:$0xff] %vm406, %v510
      %v513 = vsel %vm406, %v510, 0
      %515 = vmatprep.subr.mxu0 0.0
      %516 = vmatpush1.msra.mxu0 %v258
      %517 = vmatprep.subr.mxu0 0.0
      %518 = vmatpush1.msra.mxu0 %v259
      %519 = vmatprep.subr.mxu0 0.0
      %520 = vmatpush1.msra.mxu0 %v260
      %521 = vmatprep.subr.mxu0 0.0
      %522 = vmatpush1.msra.mxu0 %v261
      %523 = vmatprep.subr.mxu0 0.0
      %524 = vmatpush1.msra.mxu0 0.0
      %525 = vmatprep.subr.mxu0 0.0
      %526 = vmatpush1.msra.mxu0 0.0
      %527 = vmatprep.subr.mxu0 0.0
      %528 = vmatpush1.msra.mxu0 0.0
      %529 = vmatprep.subr.mxu0 0.0
      %530 = vmatpush1.msra.mxu0 0.0
      %531 = vmatprep.subr.mxu0 0.0
      %532 = vmatpush1.msra.mxu0 0.0
      %533 = vmatprep.subr.mxu0 0.0
      %534 = vmatpush1.msra.mxu0 0.0
      %535 = vmatprep.subr.mxu0 0.0
      %536 = vmatpush1.msra.mxu0 0.0
      %537 = vmatprep.subr.mxu0 0.0
      %538 = vmatpush1.msra.mxu0 0.0
      %539 = vmatprep.subr.mxu0 0.0
      %540 = vmatpush1.msra.mxu0 0.0
      %541 = vmatprep.subr.mxu0 0.0
      %542 = vmatpush1.msra.mxu0 0.0
      %543 = vmatprep.subr.mxu0 0.0
      %544 = vmatpush1.msra.mxu0 0.0
      %545 = vmatprep.subr.mxu0 0.0
      %546 = vmatpush1.msra.mxu0 0.0
      %547 = vmatprep.subr.mxu0 0.0
      %548 = vmatpush1.msra.mxu0 0.0
      %549 = vmatprep.subr.mxu0 0.0
      %550 = vmatpush1.msra.mxu0 0.0
      %551 = vmatprep.subr.mxu0 0.0
      %552 = vmatpush1.msra.mxu0 0.0
      %553 = vmatprep.subr.mxu0 0.0
      %554 = vmatpush1.msra.mxu0 0.0
      %555 = vmatprep.subr.mxu0 0.0
      %556 = vmatpush1.msra.mxu0 0.0
      %557 = vmatprep.subr.mxu0 0.0
      %558 = vmatpush1.msra.mxu0 0.0
      %559 = vmatprep.subr.mxu0 0.0
      %560 = vmatpush1.msra.mxu0 0.0
      %561 = vmatprep.subr.mxu0 0.0
      %562 = vmatpush1.msra.mxu0 0.0
      %563 = vmatprep.subr.mxu0 0.0
      %564 = vmatpush1.msra.mxu0 0.0
      %565 = vmatprep.subr.mxu0 0.0
      %566 = vmatpush1.msra.mxu0 0.0
      %567 = vmatprep.subr.mxu0 0.0
      %568 = vmatpush1.msra.mxu0 0.0
      %569 = vmatprep.subr.mxu0 0.0
      %570 = vmatpush1.msra.mxu0 0.0
      %571 = vmatprep.subr.mxu0 0.0
      %572 = vmatpush1.msra.mxu0 0.0
      %573 = vmatprep.subr.mxu0 0.0
      %574 = vmatpush1.msra.mxu0 0.0
      %575 = vmatprep.subr.mxu0 0.0
      %576 = vmatpush1.msra.mxu0 0.0
      %577 = vmatprep.subr.mxu0 0.0
      %578 = vmatpush1.msra.mxu0 0.0
      %579 = vmatprep.mubr.f32.mxu0 0.0
      %580 = vmatmul.mubr.f32.gmra.mrb[0].mxu0 %v513
      %v581 = vpop.f32.mrb[0].mxu0
      %v582 = vadd.f32 0.0, %v581
      %v583 = vpop.f32.mrb[0].mxu0
      %584 = vdwg.mxu0
      %v585 = vadd.f32 %v373, %v582
      %v586 = vadd.f32 %v585, %v485
      %v587 = vtanh.pop %v586
      %v588 = vadd.f32 %v587, 1.0
      %v589 = vmul.f32 %v588, 0.5
      %v590 = vmul.f32 %v589, %v501
      %592 = vrot.lane.b32.xlu0 %v587, 64
      %v593 = vpop.permute.xlu0 %592
      %v595 = vmul.f32 %v589, %v593
      %597 = vrot.lane.b32.xlu0 %v595, 32
      %v598 = vpop.permute.xlu0 %597
      %v600 = vadd.f32 %v590, %v598
      %v601 = vtanh.pop %v600
      %603 = vrot.lane.b32.xlu0 %v601, 64
      %v604 = vpop.permute.xlu0 %603
      %v606 = vmul.f32 %v589, %v604
      %608 = vrot.lane.b32.xlu0 %v606, 32
      %v609 = vpop.permute.xlu0 %608
      %611 = vst.msk [vmem:[#allocation2 + $0x8] sm:$0xff] %vm406, %v609
      %v612 = vsel %vm406, %v609, 0
      %614 = vmatprep.subr.mxu0 0.0
      %615 = vmatpush1.msra.mxu0 %v258
      %616 = vmatprep.subr.mxu0 0.0
      %617 = vmatpush1.msra.mxu0 %v259
      %618 = vmatprep.subr.mxu0 0.0
      %619 = vmatpush1.msra.mxu0 %v260
      %620 = vmatprep.subr.mxu0 0.0
      %621 = vmatpush1.msra.mxu0 %v261
      %622 = vmatprep.subr.mxu0 0.0
      %623 = vmatpush1.msra.mxu0 0.0
      %624 = vmatprep.subr.mxu0 0.0
      %625 = vmatpush1.msra.mxu0 0.0
      %626 = vmatprep.subr.mxu0 0.0
      %627 = vmatpush1.msra.mxu0 0.0
      %628 = vmatprep.subr.mxu0 0.0
      %629 = vmatpush1.msra.mxu0 0.0
      %630 = vmatprep.subr.mxu0 0.0
      %631 = vmatpush1.msra.mxu0 0.0
      %632 = vmatprep.subr.mxu0 0.0
      %633 = vmatpush1.msra.mxu0 0.0
      %634 = vmatprep.subr.mxu0 0.0
      %635 = vmatpush1.msra.mxu0 0.0
      %636 = vmatprep.subr.mxu0 0.0
      %637 = vmatpush1.msra.mxu0 0.0
      %638 = vmatprep.subr.mxu0 0.0
      %639 = vmatpush1.msra.mxu0 0.0
      %640 = vmatprep.subr.mxu0 0.0
      %641 = vmatpush1.msra.mxu0 0.0
      %642 = vmatprep.subr.mxu0 0.0
      %643 = vmatpush1.msra.mxu0 0.0
      %644 = vmatprep.subr.mxu0 0.0
      %645 = vmatpush1.msra.mxu0 0.0
      %646 = vmatprep.subr.mxu0 0.0
      %647 = vmatpush1.msra.mxu0 0.0
      %648 = vmatprep.subr.mxu0 0.0
      %649 = vmatpush1.msra.mxu0 0.0
      %650 = vmatprep.subr.mxu0 0.0
      %651 = vmatpush1.msra.mxu0 0.0
      %652 = vmatprep.subr.mxu0 0.0
      %653 = vmatpush1.msra.mxu0 0.0
      %654 = vmatprep.subr.mxu0 0.0
      %655 = vmatpush1.msra.mxu0 0.0
      %656 = vmatprep.subr.mxu0 0.0
      %657 = vmatpush1.msra.mxu0 0.0
      %658 = vmatprep.subr.mxu0 0.0
      %659 = vmatpush1.msra.mxu0 0.0
      %660 = vmatprep.subr.mxu0 0.0
      %661 = vmatpush1.msra.mxu0 0.0
      %662 = vmatprep.subr.mxu0 0.0
      %663 = vmatpush1.msra.mxu0 0.0
      %664 = vmatprep.subr.mxu0 0.0
      %665 = vmatpush1.msra.mxu0 0.0
      %666 = vmatprep.subr.mxu0 0.0
      %667 = vmatpush1.msra.mxu0 0.0
      %668 = vmatprep.subr.mxu0 0.0
      %669 = vmatpush1.msra.mxu0 0.0
      %670 = vmatprep.subr.mxu0 0.0
      %671 = vmatpush1.msra.mxu0 0.0
      %672 = vmatprep.subr.mxu0 0.0
      %673 = vmatpush1.msra.mxu0 0.0
      %674 = vmatprep.subr.mxu0 0.0
      %675 = vmatpush1.msra.mxu0 0.0
      %676 = vmatprep.subr.mxu0 0.0
      %677 = vmatpush1.msra.mxu0 0.0
      %678 = vmatprep.mubr.f32.mxu0 0.0
      %679 = vmatmul.mubr.f32.gmra.mrb[0].mxu0 %v612
      %v680 = vpop.f32.mrb[0].mxu0
      %v681 = vadd.f32 0.0, %v680
      %v682 = vpop.f32.mrb[0].mxu0
      %683 = vdwg.mxu0
      %v684 = vadd.f32 %v378, %v681
      %v685 = vadd.f32 %v684, %v485
      %v686 = vtanh.pop %v685
      %v687 = vadd.f32 %v686, 1.0
      %v688 = vmul.f32 %v687, 0.5
      %v689 = vmul.f32 %v688, %v600
      %691 = vrot.lane.b32.xlu0 %v686, 64
      %v692 = vpop.permute.xlu0 %691
      %v694 = vmul.f32 %v688, %v692
      %696 = vrot.lane.b32.xlu0 %v694, 32
      %v697 = vpop.permute.xlu0 %696
      %v699 = vadd.f32 %v689, %v697
      %v700 = vtanh.pop %v699
      %702 = vrot.lane.b32.xlu0 %v700, 64
      %v703 = vpop.permute.xlu0 %702
      %v705 = vmul.f32 %v688, %v703
      %707 = vrot.lane.b32.xlu0 %v705, 32
      %v708 = vpop.permute.xlu0 %707
      %710 = vst.msk [vmem:[#allocation2 + $0x10] sm:$0xff] %vm406, %v708
      %v711 = vsel %vm406, %v708, 0
      %713 = vmatprep.subr.mxu0 0.0
      %714 = vmatpush1.msra.mxu0 %v258
      %715 = vmatprep.subr.mxu0 0.0
      %716 = vmatpush1.msra.mxu0 %v259
      %717 = vmatprep.subr.mxu0 0.0
      %718 = vmatpush1.msra.mxu0 %v260
      %719 = vmatprep.subr.mxu0 0.0
      %720 = vmatpush1.msra.mxu0 %v261
      %721 = vmatprep.subr.mxu0 0.0
      %722 = vmatpush1.msra.mxu0 0.0
      %723 = vmatprep.subr.mxu0 0.0
      %724 = vmatpush1.msra.mxu0 0.0
      %725 = vmatprep.subr.mxu0 0.0
      %726 = vmatpush1.msra.mxu0 0.0
      %727 = vmatprep.subr.mxu0 0.0
      %728 = vmatpush1.msra.mxu0 0.0
      %729 = vmatprep.subr.mxu0 0.0
      %730 = vmatpush1.msra.mxu0 0.0
      %731 = vmatprep.subr.mxu0 0.0
      %732 = vmatpush1.msra.mxu0 0.0
      %733 = vmatprep.subr.mxu0 0.0
      %734 = vmatpush1.msra.mxu0 0.0
      %735 = vmatprep.subr.mxu0 0.0
      %736 = vmatpush1.msra.mxu0 0.0
      %737 = vmatprep.subr.mxu0 0.0
      %738 = vmatpush1.msra.mxu0 0.0
      %739 = vmatprep.subr.mxu0 0.0
      %740 = vmatpush1.msra.mxu0 0.0
      %741 = vmatprep.subr.mxu0 0.0
      %742 = vmatpush1.msra.mxu0 0.0
      %743 = vmatprep.subr.mxu0 0.0
      %744 = vmatpush1.msra.mxu0 0.0
      %745 = vmatprep.subr.mxu0 0.0
      %746 = vmatpush1.msra.mxu0 0.0
      %747 = vmatprep.subr.mxu0 0.0
      %748 = vmatpush1.msra.mxu0 0.0
      %749 = vmatprep.subr.mxu0 0.0
      %750 = vmatpush1.msra.mxu0 0.0
      %751 = vmatprep.subr.mxu0 0.0
      %752 = vmatpush1.msra.mxu0 0.0
      %753 = vmatprep.subr.mxu0 0.0
      %754 = vmatpush1.msra.mxu0 0.0
      %755 = vmatprep.subr.mxu0 0.0
      %756 = vmatpush1.msra.mxu0 0.0
      %757 = vmatprep.subr.mxu0 0.0
      %758 = vmatpush1.msra.mxu0 0.0
      %759 = vmatprep.subr.mxu0 0.0
      %760 = vmatpush1.msra.mxu0 0.0
      %761 = vmatprep.subr.mxu0 0.0
      %762 = vmatpush1.msra.mxu0 0.0
      %763 = vmatprep.subr.mxu0 0.0
      %764 = vmatpush1.msra.mxu0 0.0
      %765 = vmatprep.subr.mxu0 0.0
      %766 = vmatpush1.msra.mxu0 0.0
      %767 = vmatprep.subr.mxu0 0.0
      %768 = vmatpush1.msra.mxu0 0.0
      %769 = vmatprep.subr.mxu0 0.0
      %770 = vmatpush1.msra.mxu0 0.0
      %771 = vmatprep.subr.mxu0 0.0
      %772 = vmatpush1.msra.mxu0 0.0
      %773 = vmatprep.subr.mxu0 0.0
      %774 = vmatpush1.msra.mxu0 0.0
      %775 = vmatprep.subr.mxu0 0.0
      %776 = vmatpush1.msra.mxu0 0.0
      %777 = vmatprep.mubr.f32.mxu0 0.0
      %778 = vmatmul.mubr.f32.gmra.mrb[0].mxu0 %v711
      %v779 = vpop.f32.mrb[0].mxu0
      %v780 = vadd.f32 0.0, %v779
      %v781 = vpop.f32.mrb[0].mxu0
      %782 = vdwg.mxu0
      %v783 = vadd.f32 %v383, %v780
      %v784 = vadd.f32 %v783, %v485
      %v785 = vtanh.pop %v784
      %v786 = vadd.f32 %v785, 1.0
      %v787 = vmul.f32 %v786, 0.5
      %v788 = vmul.f32 %v787, %v699
      %790 = vrot.lane.b32.xlu0 %v785, 64
      %v791 = vpop.permute.xlu0 %790
      %v793 = vmul.f32 %v787, %v791
      %795 = vrot.lane.b32.xlu0 %v793, 32
      %v796 = vpop.permute.xlu0 %795
      %v798 = vadd.f32 %v788, %v796
      %v799 = vtanh.pop %v798
      %801 = vrot.lane.b32.xlu0 %v799, 64
      %v802 = vpop.permute.xlu0 %801
      %v804 = vmul.f32 %v787, %v802
      %806 = vrot.lane.b32.xlu0 %v804, 32
      %v807 = vpop.permute.xlu0 %806
      %809 = vst.msk [vmem:[#allocation2 + $0x18] sm:$0xff] %vm406, %v807
      %v810 = vsel %vm406, %v807, 0
      %812 = vmatprep.subr.mxu0 0.0
      %813 = vmatpush1.msra.mxu0 %v258
      %814 = vmatprep.subr.mxu0 0.0
      %815 = vmatpush1.msra.mxu0 %v259
      %816 = vmatprep.subr.mxu0 0.0
      %817 = vmatpush1.msra.mxu0 %v260
      %818 = vmatprep.subr.mxu0 0.0
      %819 = vmatpush1.msra.mxu0 %v261
      %820 = vmatprep.subr.mxu0 0.0
      %821 = vmatpush1.msra.mxu0 0.0
      %822 = vmatprep.subr.mxu0 0.0
      %823 = vmatpush1.msra.mxu0 0.0
      %824 = vmatprep.subr.mxu0 0.0
      %825 = vmatpush1.msra.mxu0 0.0
      %826 = vmatprep.subr.mxu0 0.0
      %827 = vmatpush1.msra.mxu0 0.0
      %828 = vmatprep.subr.mxu0 0.0
      %829 = vmatpush1.msra.mxu0 0.0
      %830 = vmatprep.subr.mxu0 0.0
      %831 = vmatpush1.msra.mxu0 0.0
      %832 = vmatprep.subr.mxu0 0.0
      %833 = vmatpush1.msra.mxu0 0.0
      %834 = vmatprep.subr.mxu0 0.0
      %835 = vmatpush1.msra.mxu0 0.0
      %836 = vmatprep.subr.mxu0 0.0
      %837 = vmatpush1.msra.mxu0 0.0
      %838 = vmatprep.subr.mxu0 0.0
      %839 = vmatpush1.msra.mxu0 0.0
      %840 = vmatprep.subr.mxu0 0.0
      %841 = vmatpush1.msra.mxu0 0.0
      %842 = vmatprep.subr.mxu0 0.0
      %843 = vmatpush1.msra.mxu0 0.0
      %844 = vmatprep.subr.mxu0 0.0
      %845 = vmatpush1.msra.mxu0 0.0
      %846 = vmatprep.subr.mxu0 0.0
      %847 = vmatpush1.msra.mxu0 0.0
      %848 = vmatprep.subr.mxu0 0.0
      %849 = vmatpush1.msra.mxu0 0.0
      %850 = vmatprep.subr.mxu0 0.0
      %851 = vmatpush1.msra.mxu0 0.0
      %852 = vmatprep.subr.mxu0 0.0
      %853 = vmatpush1.msra.mxu0 0.0
      %854 = vmatprep.subr.mxu0 0.0
      %855 = vmatpush1.msra.mxu0 0.0
      %856 = vmatprep.subr.mxu0 0.0
      %857 = vmatpush1.msra.mxu0 0.0
      %858 = vmatprep.subr.mxu0 0.0
      %859 = vmatpush1.msra.mxu0 0.0
      %860 = vmatprep.subr.mxu0 0.0
      %861 = vmatpush1.msra.mxu0 0.0
      %862 = vmatprep.subr.mxu0 0.0
      %863 = vmatpush1.msra.mxu0 0.0
      %864 = vmatprep.subr.mxu0 0.0
      %865 = vmatpush1.msra.mxu0 0.0
      %866 = vmatprep.subr.mxu0 0.0
      %867 = vmatpush1.msra.mxu0 0.0
      %868 = vmatprep.subr.mxu0 0.0
      %869 = vmatpush1.msra.mxu0 0.0
      %870 = vmatprep.subr.mxu0 0.0
      %871 = vmatpush1.msra.mxu0 0.0
      %872 = vmatprep.subr.mxu0 0.0
      %873 = vmatpush1.msra.mxu0 0.0
      %874 = vmatprep.subr.mxu0 0.0
      %875 = vmatpush1.msra.mxu0 0.0
      %876 = vmatprep.mubr.f32.mxu0 0.0
      %877 = vmatmul.mubr.f32.gmra.mrb[0].mxu0 %v810
      %v878 = vpop.f32.mrb[0].mxu0
      %v879 = vadd.f32 0.0, %v878
      %v880 = vpop.f32.mrb[0].mxu0
      %881 = vdwg.mxu0
      %v882 = vadd.f32 %v388, %v879
      %v883 = vadd.f32 %v882, %v485
      %v884 = vtanh.pop %v883
      %v885 = vadd.f32 %v884, 1.0
      %v886 = vmul.f32 %v885, 0.5
      %v887 = vmul.f32 %v886, %v798
      %889 = vrot.lane.b32.xlu0 %v884, 64
      %v890 = vpop.permute.xlu0 %889
      %v892 = vmul.f32 %v886, %v890
      %894 = vrot.lane.b32.xlu0 %v892, 32
      %v895 = vpop.permute.xlu0 %894
      %v897 = vadd.f32 %v887, %v895
      %v898 = vtanh.pop %v897
      %900 = vrot.lane.b32.xlu0 %v898, 64
      %v901 = vpop.permute.xlu0 %900
      %v903 = vmul.f32 %v886, %v901
      %905 = vrot.lane.b32.xlu0 %v903, 32
      %v906 = vpop.permute.xlu0 %905
      %908 = vst.msk [vmem:[#allocation2 + $0x20] sm:$0xff] %vm406, %v906
      %v909 = vsel %vm406, %v906, 0
      %911 = vmatprep.subr.mxu0 0.0
      %912 = vmatpush1.msra.mxu0 %v258
      %913 = vmatprep.subr.mxu0 0.0
      %914 = vmatpush1.msra.mxu0 %v259
      %915 = vmatprep.subr.mxu0 0.0
      %916 = vmatpush1.msra.mxu0 %v260
      %917 = vmatprep.subr.mxu0 0.0
      %918 = vmatpush1.msra.mxu0 %v261
      %919 = vmatprep.subr.mxu0 0.0
      %920 = vmatpush1.msra.mxu0 0.0
      %921 = vmatprep.subr.mxu0 0.0
      %922 = vmatpush1.msra.mxu0 0.0
      %923 = vmatprep.subr.mxu0 0.0
      %924 = vmatpush1.msra.mxu0 0.0
      %925 = vmatprep.subr.mxu0 0.0
      %926 = vmatpush1.msra.mxu0 0.0
      %927 = vmatprep.subr.mxu0 0.0
      %928 = vmatpush1.msra.mxu0 0.0
      %929 = vmatprep.subr.mxu0 0.0
      %930 = vmatpush1.msra.mxu0 0.0
      %931 = vmatprep.subr.mxu0 0.0
      %932 = vmatpush1.msra.mxu0 0.0
      %933 = vmatprep.subr.mxu0 0.0
      %934 = vmatpush1.msra.mxu0 0.0
      %935 = vmatprep.subr.mxu0 0.0
      %936 = vmatpush1.msra.mxu0 0.0
      %937 = vmatprep.subr.mxu0 0.0
      %938 = vmatpush1.msra.mxu0 0.0
      %939 = vmatprep.subr.mxu0 0.0
      %940 = vmatpush1.msra.mxu0 0.0
      %941 = vmatprep.subr.mxu0 0.0
      %942 = vmatpush1.msra.mxu0 0.0
      %943 = vmatprep.subr.mxu0 0.0
      %944 = vmatpush1.msra.mxu0 0.0
      %945 = vmatprep.subr.mxu0 0.0
      %946 = vmatpush1.msra.mxu0 0.0
      %947 = vmatprep.subr.mxu0 0.0
      %948 = vmatpush1.msra.mxu0 0.0
      %949 = vmatprep.subr.mxu0 0.0
      %950 = vmatpush1.msra.mxu0 0.0
      %951 = vmatprep.subr.mxu0 0.0
      %952 = vmatpush1.msra.mxu0 0.0
      %953 = vmatprep.subr.mxu0 0.0
      %954 = vmatpush1.msra.mxu0 0.0
      %955 = vmatprep.subr.mxu0 0.0
      %956 = vmatpush1.msra.mxu0 0.0
      %957 = vmatprep.subr.mxu0 0.0
      %958 = vmatpush1.msra.mxu0 0.0
      %959 = vmatprep.subr.mxu0 0.0
      %960 = vmatpush1.msra.mxu0 0.0
      %961 = vmatprep.subr.mxu0 0.0
      %962 = vmatpush1.msra.mxu0 0.0
      %963 = vmatprep.subr.mxu0 0.0
      %964 = vmatpush1.msra.mxu0 0.0
      %965 = vmatprep.subr.mxu0 0.0
      %966 = vmatpush1.msra.mxu0 0.0
      %967 = vmatprep.subr.mxu0 0.0
      %968 = vmatpush1.msra.mxu0 0.0
      %969 = vmatprep.subr.mxu0 0.0
      %970 = vmatpush1.msra.mxu0 0.0
      %971 = vmatprep.subr.mxu0 0.0
      %972 = vmatpush1.msra.mxu0 0.0
      %973 = vmatprep.subr.mxu0 0.0
      %974 = vmatpush1.msra.mxu0 0.0
      %975 = vmatprep.mubr.f32.mxu0 0.0
      %976 = vmatmul.mubr.f32.gmra.mrb[0].mxu0 %v909
      %v977 = vpop.f32.mrb[0].mxu0
      %v978 = vadd.f32 0.0, %v977
      %v979 = vpop.f32.mrb[0].mxu0
      %980 = vdwg.mxu0
      %v981 = vadd.f32 %v393, %v978
      %v982 = vadd.f32 %v981, %v485
      %v983 = vtanh.pop %v982
      %v984 = vadd.f32 %v983, 1.0
      %v985 = vmul.f32 %v984, 0.5
      %v986 = vmul.f32 %v985, %v897
      %988 = vrot.lane.b32.xlu0 %v983, 64
      %v989 = vpop.permute.xlu0 %988
      %v991 = vmul.f32 %v985, %v989
      %993 = vrot.lane.b32.xlu0 %v991, 32
      %v994 = vpop.permute.xlu0 %993
      %v996 = vadd.f32 %v986, %v994
      %v997 = vtanh.pop %v996
      %999 = vrot.lane.b32.xlu0 %v997, 64
      %v1000 = vpop.permute.xlu0 %999
      %v1002 = vmul.f32 %v985, %v1000
      %1004 = vrot.lane.b32.xlu0 %v1002, 32
      %v1005 = vpop.permute.xlu0 %1004
      %1007 = vst.msk [vmem:[#allocation2 + $0x28] sm:$0xff] %vm406, %v1005
      %v1008 = vsel %vm406, %v1005, 0
      %1010 = vmatprep.subr.mxu0 0.0
      %1011 = vmatpush1.msra.mxu0 %v258
      %1012 = vmatprep.subr.mxu0 0.0
      %1013 = vmatpush1.msra.mxu0 %v259
      %1014 = vmatprep.subr.mxu0 0.0
      %1015 = vmatpush1.msra.mxu0 %v260
      %1016 = vmatprep.subr.mxu0 0.0
      %1017 = vmatpush1.msra.mxu0 %v261
      %1018 = vmatprep.subr.mxu0 0.0
      %1019 = vmatpush1.msra.mxu0 0.0
      %1020 = vmatprep.subr.mxu0 0.0
      %1021 = vmatpush1.msra.mxu0 0.0
      %1022 = vmatprep.subr.mxu0 0.0
      %1023 = vmatpush1.msra.mxu0 0.0
      %1024 = vmatprep.subr.mxu0 0.0
      %1025 = vmatpush1.msra.mxu0 0.0
      %1026 = vmatprep.subr.mxu0 0.0
      %1027 = vmatpush1.msra.mxu0 0.0
      %1028 = vmatprep.subr.mxu0 0.0
      %1029 = vmatpush1.msra.mxu0 0.0
      %1030 = vmatprep.subr.mxu0 0.0
      %1031 = vmatpush1.msra.mxu0 0.0
      %1032 = vmatprep.subr.mxu0 0.0
      %1033 = vmatpush1.msra.mxu0 0.0
      %1034 = vmatprep.subr.mxu0 0.0
      %1035 = vmatpush1.msra.mxu0 0.0
      %1036 = vmatprep.subr.mxu0 0.0
      %1037 = vmatpush1.msra.mxu0 0.0
      %1038 = vmatprep.subr.mxu0 0.0
      %1039 = vmatpush1.msra.mxu0 0.0
      %1040 = vmatprep.subr.mxu0 0.0
      %1041 = vmatpush1.msra.mxu0 0.0
      %1042 = vmatprep.subr.mxu0 0.0
      %1043 = vmatpush1.msra.mxu0 0.0
      %1044 = vmatprep.subr.mxu0 0.0
      %1045 = vmatpush1.msra.mxu0 0.0
      %1046 = vmatprep.subr.mxu0 0.0
      %1047 = vmatpush1.msra.mxu0 0.0
      %1048 = vmatprep.subr.mxu0 0.0
      %1049 = vmatpush1.msra.mxu0 0.0
      %1050 = vmatprep.subr.mxu0 0.0
      %1051 = vmatpush1.msra.mxu0 0.0
      %1052 = vmatprep.subr.mxu0 0.0
      %1053 = vmatpush1.msra.mxu0 0.0
      %1054 = vmatprep.subr.mxu0 0.0
      %1055 = vmatpush1.msra.mxu0 0.0
      %1056 = vmatprep.subr.mxu0 0.0
      %1057 = vmatpush1.msra.mxu0 0.0
      %1058 = vmatprep.subr.mxu0 0.0
      %1059 = vmatpush1.msra.mxu0 0.0
      %1060 = vmatprep.subr.mxu0 0.0
      %1061 = vmatpush1.msra.mxu0 0.0
      %1062 = vmatprep.subr.mxu0 0.0
      %1063 = vmatpush1.msra.mxu0 0.0
      %1064 = vmatprep.subr.mxu0 0.0
      %1065 = vmatpush1.msra.mxu0 0.0
      %1066 = vmatprep.subr.mxu0 0.0
      %1067 = vmatpush1.msra.mxu0 0.0
      %1068 = vmatprep.subr.mxu0 0.0
      %1069 = vmatpush1.msra.mxu0 0.0
      %1070 = vmatprep.subr.mxu0 0.0
      %1071 = vmatpush1.msra.mxu0 0.0
      %1072 = vmatprep.subr.mxu0 0.0
      %1073 = vmatpush1.msra.mxu0 0.0
      %1074 = vmatprep.mubr.f32.mxu0 0.0
      %1075 = vmatmul.mubr.f32.gmra.mrb[0].mxu0 %v1008
      %v1076 = vpop.f32.mrb[0].mxu0
      %v1077 = vadd.f32 0.0, %v1076
      %v1078 = vpop.f32.mrb[0].mxu0
      %1079 = vdwg.mxu0
      %v1080 = vadd.f32 %v398, %v1077
      %v1081 = vadd.f32 %v1080, %v485
      %v1082 = vtanh.pop %v1081
      %v1083 = vadd.f32 %v1082, 1.0
      %v1084 = vmul.f32 %v1083, 0.5
      %v1085 = vmul.f32 %v1084, %v996
      %1087 = vrot.lane.b32.xlu0 %v1082, 64
      %v1088 = vpop.permute.xlu0 %1087
      %v1090 = vmul.f32 %v1084, %v1088
      %1092 = vrot.lane.b32.xlu0 %v1090, 32
      %v1093 = vpop.permute.xlu0 %1092
      %v1095 = vadd.f32 %v1085, %v1093
      %v1096 = vtanh.pop %v1095
      %1098 = vrot.lane.b32.xlu0 %v1096, 64
      %v1099 = vpop.permute.xlu0 %1098
      %v1101 = vmul.f32 %v1084, %v1099
      %1103 = vrot.lane.b32.xlu0 %v1101, 32
      %v1104 = vpop.permute.xlu0 %1103
      %1106 = vst.msk [vmem:[#allocation2 + $0x30] sm:$0xff] %vm406, %v1104
      %v1107 = vsel %vm406, %v1104, 0
      %1109 = vmatprep.subr.mxu0 0.0
      %1110 = vmatpush1.msra.mxu0 %v258
      %1111 = vmatprep.subr.mxu0 0.0
      %1112 = vmatpush1.msra.mxu0 %v259
      %1113 = vmatprep.subr.mxu0 0.0
      %1114 = vmatpush1.msra.mxu0 %v260
      %1115 = vmatprep.subr.mxu0 0.0
      %1116 = vmatpush1.msra.mxu0 %v261
      %1117 = vmatprep.subr.mxu0 0.0
      %1118 = vmatpush1.msra.mxu0 0.0
      %1119 = vmatprep.subr.mxu0 0.0
      %1120 = vmatpush1.msra.mxu0 0.0
      %1121 = vmatprep.subr.mxu0 0.0
      %1122 = vmatpush1.msra.mxu0 0.0
      %1123 = vmatprep.subr.mxu0 0.0
      %1124 = vmatpush1.msra.mxu0 0.0
      %1125 = vmatprep.subr.mxu0 0.0
      %1126 = vmatpush1.msra.mxu0 0.0
      %1127 = vmatprep.subr.mxu0 0.0
      %1128 = vmatpush1.msra.mxu0 0.0
      %1129 = vmatprep.subr.mxu0 0.0
      %1130 = vmatpush1.msra.mxu0 0.0
      %1131 = vmatprep.subr.mxu0 0.0
      %1132 = vmatpush1.msra.mxu0 0.0
      %1133 = vmatprep.subr.mxu0 0.0
      %1134 = vmatpush1.msra.mxu0 0.0
      %1135 = vmatprep.subr.mxu0 0.0
      %1136 = vmatpush1.msra.mxu0 0.0
      %1137 = vmatprep.subr.mxu0 0.0
      %1138 = vmatpush1.msra.mxu0 0.0
      %1139 = vmatprep.subr.mxu0 0.0
      %1140 = vmatpush1.msra.mxu0 0.0
      %1141 = vmatprep.subr.mxu0 0.0
      %1142 = vmatpush1.msra.mxu0 0.0
      %1143 = vmatprep.subr.mxu0 0.0
      %1144 = vmatpush1.msra.mxu0 0.0
      %1145 = vmatprep.subr.mxu0 0.0
      %1146 = vmatpush1.msra.mxu0 0.0
      %1147 = vmatprep.subr.mxu0 0.0
      %1148 = vmatpush1.msra.mxu0 0.0
      %1149 = vmatprep.subr.mxu0 0.0
      %1150 = vmatpush1.msra.mxu0 0.0
      %1151 = vmatprep.subr.mxu0 0.0
      %1152 = vmatpush1.msra.mxu0 0.0
      %1153 = vmatprep.subr.mxu0 0.0
      %1154 = vmatpush1.msra.mxu0 0.0
      %1155 = vmatprep.subr.mxu0 0.0
      %1156 = vmatpush1.msra.mxu0 0.0
      %1157 = vmatprep.subr.mxu0 0.0
      %1158 = vmatpush1.msra.mxu0 0.0
      %1159 = vmatprep.subr.mxu0 0.0
      %1160 = vmatpush1.msra.mxu0 0.0
      %1161 = vmatprep.subr.mxu0 0.0
      %1162 = vmatpush1.msra.mxu0 0.0
      %1163 = vmatprep.subr.mxu0 0.0
      %1164 = vmatpush1.msra.mxu0 0.0
      %1165 = vmatprep.subr.mxu0 0.0
      %1166 = vmatpush1.msra.mxu0 0.0
      %1167 = vmatprep.subr.mxu0 0.0
      %1168 = vmatpush1.msra.mxu0 0.0
      %1169 = vmatprep.subr.mxu0 0.0
      %1170 = vmatpush1.msra.mxu0 0.0
      %1171 = vmatprep.subr.mxu0 0.0
      %1172 = vmatpush1.msra.mxu0 0.0
      %1173 = vmatprep.mubr.f32.mxu0 0.0
      %1174 = vmatmul.mubr.f32.gmra.mrb[0].mxu0 %v1107
      %v1175 = vpop.f32.mrb[0].mxu0
      %v1176 = vadd.f32 0.0, %v1175
      %v1177 = vpop.f32.mrb[0].mxu0
      %1178 = vdwg.mxu0
      %v1179 = vadd.f32 %v403, %v1176
      %v1180 = vadd.f32 %v1179, %v485
      %v1181 = vtanh.pop %v1180
      %v1182 = vadd.f32 %v1181, 1.0
      %v1183 = vmul.f32 %v1182, 0.5
      %v1184 = vmul.f32 %v1183, %v1095
      %1186 = vrot.lane.b32.xlu0 %v1181, 64
      %v1187 = vpop.permute.xlu0 %1186
      %v1189 = vmul.f32 %v1183, %v1187
      %1191 = vrot.lane.b32.xlu0 %v1189, 32
      %v1192 = vpop.permute.xlu0 %1191
      %v1194 = vadd.f32 %v1184, %v1192
      %v1195 = vtanh.pop %v1194
      %1197 = vrot.lane.b32.xlu0 %v1195, 64
      %v1198 = vpop.permute.xlu0 %1197
      %v1200 = vmul.f32 %v1183, %v1198
      %1202 = vrot.lane.b32.xlu0 %v1200, 32
      %v1203 = vpop.permute.xlu0 %1202
      %1205 = vst.msk [vmem:[#allocation2 + $0x38] sm:$0xff] %vm406, %v1203
      %v1206 = vld [vmem:[#allocation2] sm:$0xff]
      %v1207 = vld [vmem:[#allocation2 + $0x8] sm:$0xff]
      %v1208 = vld [vmem:[#allocation2 + $0x10] sm:$0xff]
      %v1209 = vld [vmem:[#allocation2 + $0x18] sm:$0xff]
      %v1210 = vld [vmem:[#allocation2 + $0x20] sm:$0xff]
      %v1211 = vld [vmem:[#allocation2 + $0x28] sm:$0xff]
      %v1212 = vld [vmem:[#allocation2 + $0x30] sm:$0xff]
      %v1213 = vld [vmem:[#allocation2 + $0x38] sm:$0xff]
      %v1215 = vlaneseq
      %v1216 = vshrl.u32 %v1215, 7
      %v1217 = vsub.s32 0, %v1216
      %v1218 = vrot.slane %v267, %v1217
      %v1221 = vsel %vm406, %v1206, 0
      %v1224 = vsel %vm406, %v1207, 0
      %v1227 = vsel %vm406, %v1208, 0
      %v1230 = vsel %vm406, %v1209, 0
      %v1233 = vsel %vm406, %v1210, 0
      %v1236 = vsel %vm406, %v1211, 0
      %v1239 = vsel %vm406, %v1212, 0
      %v1242 = vsel %vm406, %v1213, 0
      %1244 = vmatprep.subr.mxu0 0.0
      %1245 = vmatpush1.msra.mxu0 %v263
      %1246 = vmatprep.subr.mxu0 0.0
      %1247 = vmatpush1.msra.mxu0 %v264
      %1248 = vmatprep.subr.mxu0 0.0
      %1249 = vmatpush1.msra.mxu0 %v265
      %1250 = vmatprep.subr.mxu0 0.0
      %1251 = vmatpush1.msra.mxu0 %v266
      %1252 = vmatprep.subr.mxu0 0.0
      %1253 = vmatpush1.msra.mxu0 0.0
      %1254 = vmatprep.subr.mxu0 0.0
      %1255 = vmatpush1.msra.mxu0 0.0
      %1256 = vmatprep.subr.mxu0 0.0
      %1257 = vmatpush1.msra.mxu0 0.0
      %1258 = vmatprep.subr.mxu0 0.0
      %1259 = vmatpush1.msra.mxu0 0.0
      %1260 = vmatprep.subr.mxu0 0.0
      %1261 = vmatpush1.msra.mxu0 0.0
      %1262 = vmatprep.subr.mxu0 0.0
      %1263 = vmatpush1.msra.mxu0 0.0
      %1264 = vmatprep.subr.mxu0 0.0
      %1265 = vmatpush1.msra.mxu0 0.0
      %1266 = vmatprep.subr.mxu0 0.0
      %1267 = vmatpush1.msra.mxu0 0.0
      %1268 = vmatprep.subr.mxu0 0.0
      %1269 = vmatpush1.msra.mxu0 0.0
      %1270 = vmatprep.subr.mxu0 0.0
      %1271 = vmatpush1.msra.mxu0 0.0
      %1272 = vmatprep.subr.mxu0 0.0
      %1273 = vmatpush1.msra.mxu0 0.0
      %1274 = vmatprep.subr.mxu0 0.0
      %1275 = vmatpush1.msra.mxu0 0.0
      %1276 = vmatprep.subr.mxu0 0.0
      %1277 = vmatpush1.msra.mxu0 0.0
      %1278 = vmatprep.subr.mxu0 0.0
      %1279 = vmatpush1.msra.mxu0 0.0
      %1280 = vmatprep.subr.mxu0 0.0
      %1281 = vmatpush1.msra.mxu0 0.0
      %1282 = vmatprep.subr.mxu0 0.0
      %1283 = vmatpush1.msra.mxu0 0.0
      %1284 = vmatprep.subr.mxu0 0.0
      %1285 = vmatpush1.msra.mxu0 0.0
      %1286 = vmatprep.subr.mxu0 0.0
      %1287 = vmatpush1.msra.mxu0 0.0
      %1288 = vmatprep.subr.mxu0 0.0
      %1289 = vmatpush1.msra.mxu0 0.0
      %1290 = vmatprep.subr.mxu0 0.0
      %1291 = vmatpush1.msra.mxu0 0.0
      %1292 = vmatprep.subr.mxu0 0.0
      %1293 = vmatpush1.msra.mxu0 0.0
      %1294 = vmatprep.subr.mxu0 0.0
      %1295 = vmatpush1.msra.mxu0 0.0
      %1296 = vmatprep.subr.mxu0 0.0
      %1297 = vmatpush1.msra.mxu0 0.0
      %1298 = vmatprep.subr.mxu0 0.0
      %1299 = vmatpush1.msra.mxu0 0.0
      %1300 = vmatprep.subr.mxu0 0.0
      %1301 = vmatpush1.msra.mxu0 0.0
      %1302 = vmatprep.subr.mxu0 0.0
      %1303 = vmatpush1.msra.mxu0 0.0
      %1304 = vmatprep.subr.mxu0 0.0
      %1305 = vmatpush1.msra.mxu0 0.0
      %1306 = vmatprep.subr.mxu0 0.0
      %1307 = vmatpush1.msra.mxu0 0.0
      %1308 = vmatprep.mubr.f32.mxu0 0.0
      %1309 = vmatmul.mubr.f32.gmra.mrb[0].mxu0 %v1221
      %v1310 = vpop.f32.mrb[0].mxu0
      %v1311 = vadd.f32 %v1218, %v1310
      %v1312 = vpop.f32.mrb[0].mxu0
      %1313 = vmatprep.mubr.f32.mxu0 0.0
      %1314 = vmatmul.mubr.f32.gmra.mrb[0].mxu0 %v1224
      %v1315 = vpop.f32.mrb[0].mxu0
      %v1316 = vadd.f32 %v1218, %v1315
      %v1317 = vpop.f32.mrb[0].mxu0
      %1318 = vmatprep.mubr.f32.mxu0 0.0
      %1319 = vmatmul.mubr.f32.gmra.mrb[0].mxu0 %v1227
      %v1320 = vpop.f32.mrb[0].mxu0
      %v1321 = vadd.f32 %v1218, %v1320
      %v1322 = vpop.f32.mrb[0].mxu0
      %1323 = vmatprep.mubr.f32.mxu0 0.0
      %1324 = vmatmul.mubr.f32.gmra.mrb[0].mxu0 %v1230
      %v1325 = vpop.f32.mrb[0].mxu0
      %v1326 = vadd.f32 %v1218, %v1325
      %v1327 = vpop.f32.mrb[0].mxu0
      %1328 = vmatprep.mubr.f32.mxu0 0.0
      %1329 = vmatmul.mubr.f32.gmra.mrb[0].mxu0 %v1233
      %v1330 = vpop.f32.mrb[0].mxu0
      %v1331 = vadd.f32 %v1218, %v1330
      %v1332 = vpop.f32.mrb[0].mxu0
      %1333 = vmatprep.mubr.f32.mxu0 0.0
      %1334 = vmatmul.mubr.f32.gmra.mrb[0].mxu0 %v1236
      %v1335 = vpop.f32.mrb[0].mxu0
      %v1336 = vadd.f32 %v1218, %v1335
      %v1337 = vpop.f32.mrb[0].mxu0
      %1338 = vmatprep.mubr.f32.mxu0 0.0
      %1339 = vmatmul.mubr.f32.gmra.mrb[0].mxu0 %v1239
      %v1340 = vpop.f32.mrb[0].mxu0
      %v1341 = vadd.f32 %v1218, %v1340
      %v1342 = vpop.f32.mrb[0].mxu0
      %1343 = vmatprep.mubr.f32.mxu0 0.0
      %1344 = vmatmul.mubr.f32.gmra.mrb[0].mxu0 %v1242
      %v1345 = vpop.f32.mrb[0].mxu0
      %v1346 = vadd.f32 %v1218, %v1345
      %v1347 = vpop.f32.mrb[0].mxu0
      %1348 = vdwg.mxu0
      %vm1349 = vcmask 64512
      %v1350 = vsel %vm1349, %v1311, -inf
      %1351 = vmax.xlane.f32.xlu0 %v1350
      %v1352 = vpop.xlane.xlu0 %1351
      %v1353 = vsel %vm1349, %v1316, -inf
      %1354 = vmax.xlane.f32.xlu0 %v1353
      %v1355 = vpop.xlane.xlu0 %1354
      %v1356 = vsel %vm1349, %v1321, -inf
      %1357 = vmax.xlane.f32.xlu0 %v1356
      %v1358 = vpop.xlane.xlu0 %1357
      %v1359 = vsel %vm1349, %v1326, -inf
      %1360 = vmax.xlane.f32.xlu0 %v1359
      %v1361 = vpop.xlane.xlu0 %1360
      %v1362 = vsel %vm1349, %v1331, -inf
      %1363 = vmax.xlane.f32.xlu0 %v1362
      %v1364 = vpop.xlane.xlu0 %1363
      %v1365 = vsel %vm1349, %v1336, -inf
      %1366 = vmax.xlane.f32.xlu0 %v1365
      %v1367 = vpop.xlane.xlu0 %1366
      %v1368 = vsel %vm1349, %v1341, -inf
      %1369 = vmax.xlane.f32.xlu0 %v1368
      %v1370 = vpop.xlane.xlu0 %1369
      %v1371 = vsel %vm1349, %v1346, -inf
      %1372 = vmax.xlane.f32.xlu0 %v1371
      %v1373 = vpop.xlane.xlu0 %1372
      %v1374 = vsub.f32 %v1311, %v1352
      %v1375 = vsub.f32 %v1316, %v1355
      %v1376 = vsub.f32 %v1321, %v1358
      %v1377 = vsub.f32 %v1326, %v1361
      %v1378 = vsub.f32 %v1331, %v1364
      %v1379 = vsub.f32 %v1336, %v1367
      %v1380 = vsub.f32 %v1341, %v1370
      %v1381 = vsub.f32 %v1346, %v1373
      %v1382 = vmul.f32 %v1374, 1.442695
      %v1383 = vpow.pop %v1382
      %v1384 = vmul.f32 %v1375, 1.442695
      %v1385 = vpow.pop %v1384
      %v1386 = vmul.f32 %v1376, 1.442695
      %v1387 = vpow.pop %v1386
      %v1388 = vmul.f32 %v1377, 1.442695
      %v1389 = vpow.pop %v1388
      %v1390 = vmul.f32 %v1378, 1.442695
      %v1391 = vpow.pop %v1390
      %v1392 = vmul.f32 %v1379, 1.442695
      %v1393 = vpow.pop %v1392
      %v1394 = vmul.f32 %v1380, 1.442695
      %v1395 = vpow.pop %v1394
      %v1396 = vmul.f32 %v1381, 1.442695
      %v1397 = vpow.pop %v1396
      %v1398 = vsel %vm1349, %v1383, 0.0
      %1399 = vadd.xlane.f32.xlu0 %v1398
      %v1400 = vpop.xlane.xlu0 %1399
      %v1401 = vsel %vm1349, %v1385, 0.0
      %1402 = vadd.xlane.f32.xlu0 %v1401
      %v1403 = vpop.xlane.xlu0 %1402
      %v1404 = vsel %vm1349, %v1387, 0.0
      %1405 = vadd.xlane.f32.xlu0 %v1404
      %v1406 = vpop.xlane.xlu0 %1405
      %v1407 = vsel %vm1349, %v1389, 0.0
      %1408 = vadd.xlane.f32.xlu0 %v1407
      %v1409 = vpop.xlane.xlu0 %1408
      %v1410 = vsel %vm1349, %v1391, 0.0
      %1411 = vadd.xlane.f32.xlu0 %v1410
      %v1412 = vpop.xlane.xlu0 %1411
      %v1413 = vsel %vm1349, %v1393, 0.0
      %1414 = vadd.xlane.f32.xlu0 %v1413
      %v1415 = vpop.xlane.xlu0 %1414
      %v1416 = vsel %vm1349, %v1395, 0.0
      %1417 = vadd.xlane.f32.xlu0 %v1416
      %v1418 = vpop.xlane.xlu0 %1417
      %v1419 = vsel %vm1349, %v1397, 0.0
      %1420 = vadd.xlane.f32.xlu0 %v1419
      %v1421 = vpop.xlane.xlu0 %1420
      %v1422 = vlog2.pop %v1400
      %v1423 = vmul.f32 %v1422, 0.6931472
      %v1424 = vlog2.pop %v1403
      %v1425 = vmul.f32 %v1424, 0.6931472
      %v1426 = vlog2.pop %v1406
      %v1427 = vmul.f32 %v1426, 0.6931472
      %v1428 = vlog2.pop %v1409
      %v1429 = vmul.f32 %v1428, 0.6931472
      %v1430 = vlog2.pop %v1412
      %v1431 = vmul.f32 %v1430, 0.6931472
      %v1432 = vlog2.pop %v1415
      %v1433 = vmul.f32 %v1432, 0.6931472
      %v1434 = vlog2.pop %v1418
      %v1435 = vmul.f32 %v1434, 0.6931472
      %v1436 = vlog2.pop %v1421
      %v1437 = vmul.f32 %v1436, 0.6931472
      %v1438 = vsub.f32 %v1374, %v1423
      %v1439 = vsub.f32 %v1375, %v1425
      %v1440 = vsub.f32 %v1376, %v1427
      %v1441 = vsub.f32 %v1377, %v1429
      %v1442 = vsub.f32 %v1378, %v1431
      %v1443 = vsub.f32 %v1379, %v1433
      %v1444 = vsub.f32 %v1380, %v1435
      %v1445 = vsub.f32 %v1381, %v1437
      %1446 = vst.msk [vmem:[%s253] sm:$0xff] %vm1349, %v1438
      %1447 = vst.msk [vmem:[%s253 + $0x8] sm:$0xff] %vm1349, %v1439
      %1448 = vst.msk [vmem:[%s253 + $0x10] sm:$0xff] %vm1349, %v1440
      %1449 = vst.msk [vmem:[%s253 + $0x18] sm:$0xff] %vm1349, %v1441
      %1450 = vst.msk [vmem:[%s253 + $0x20] sm:$0xff] %vm1349, %v1442
      %1451 = vst.msk [vmem:[%s253 + $0x28] sm:$0xff] %vm1349, %v1443
      %1452 = vst.msk [vmem:[%s253 + $0x30] sm:$0xff] %vm1349, %v1444
      %1453 = vst.msk [vmem:[%s253 + $0x38] sm:$0xff] %vm1349, %v1445
      %s1454 = smul.u32 8, %s17
      %p1455 = scmp.lt.s32.totalorder %s1454, 15
      %s1456 = scalar_select %p1455, %s1454, 15
      %s1457 = smul.addr %s1456, 8
      %s1458 = scalar_lea.vmem %s6, %s1457
      // Predicated region
      $region45: #{tpu_custom_call.1} parent=43 // pred_check
        %p1459 = pneg %p166
      $region46: #{tpu_custom_call.1} parent=43 // pred_check_branch
        %1461 = sbr.rel (%p1459) target = $region48
      $region47: #{tpu_custom_call.1} parent=43 // pred_region
        %s1462 = smul.u32 8, %s17
      $region48: #{tpu_custom_call.1} parent=43 // pred_fallthru
        _
    $region44: #{tpu_custom_call.1} parent=5 // pred_fallthru
      _
    %p1463 = scmp.le.s32.totalorder 2, %s12
    // Predicated region
    $region49: #{tpu_custom_call.1} parent=5 // pred_check
      %p1464 = pneg %p1463
    $region50: #{tpu_custom_call.1} parent=5 // pred_check_branch
      %1466 = sbr.rel (%p1464) target = $region52
    $region51: #{tpu_custom_call.1} parent=5 // pred_region
      %s1467 = ssub.s32 %s12, 2
      // Predicated region
      $region53: #{tpu_custom_call.1} parent=51 // pred_check
        %p1468 = pneg %p172
      $region54: #{tpu_custom_call.1} parent=51 // pred_check_branch
        %1470 = sbr.rel (%p1468) target = $region56
      $region55: #{tpu_custom_call.1} parent=51 // pred_region
        %s1471 = smul.u32 8, %s18
        %p1472 = scmp.lt.s32.totalorder %s1471, 15
        %s1473 = scalar_select %p1472, %s1471, 15
        %s1474 = smul.addr %s1473, 8
        %s1475 = scalar_lea.vmem %s6, %s1474
      $region56: #{tpu_custom_call.1} parent=51 // pred_fallthru
        _
    $region52: #{tpu_custom_call.1} parent=5 // pred_fallthru
      _
  $region6: #{tpu_custom_call.1} parent=0 // loop_footer
    %s16 = sadd.s32 1, %s12
  $region7: #{tpu_custom_call.1} parent=0 // loop_footer_branch
    %11 = sbr.rel target = $region3
  $region8: #{tpu_custom_call.1} parent=0 // loop_exit
    _

</llo_original>
